<compile_context>
chip_gen: v5e
topology: v5e:2x2
jax: 0.10.0
libtpu: 0.0.40
codegen_flags: <defaults>
</compile_context>

<pallas_src>
import functools
import math

import jax
import jax.numpy as jnp
from jax.experimental import pallas as pl
from jax.experimental.pallas import tpu as pltpu

# ----------------------- configuration (small, synthetic) -----------------------
HIDDEN = 768
HEADS = 12
HEAD_DIM = HIDDEN // HEADS          # 64
FFN = 3072
LAYERS = 2
VOCAB = 1000
TYPE_VOCAB = 2
TEXT_LEN = 64
VIS_LEN = 32
AUD_LEN = 32
SEQ = TEXT_LEN + VIS_LEN + AUD_LEN  # 128 (>= 121 so tokens 0 / 50 / 120 exist)
VIS_DIM = 512
AUD_DIM = 128
BATCH = 2
LN_EPS = 1e-12


def _pick_tile(n, t):
    return t if n % t == 0 else n


# ----------------------------- Pallas kernels -----------------------------------
def _dense_kernel(x_ref, w_ref, b_ref, o_ref, *, act):
    x = x_ref[...].astype(jnp.bfloat16)
    w = w_ref[...].astype(jnp.bfloat16)
    y = jnp.dot(x, w, preferred_element_type=jnp.float32)
    y = y + b_ref[...].astype(jnp.float32)
    if act == "gelu":
        # TODO(synk): jax.nn.gelu is the tanh approximation; PyTorch nn.GELU
        # default is exact erf (encoder internals are a stand-in anyway).
        y = jax.nn.gelu(y)
    elif act == "tanh":
        y = jnp.tanh(y)
    o_ref[...] = y.astype(o_ref.dtype)


def dense(x, w_bf16, b, *, act=None, tm=128, tn=768):
    """y = act(x @ W + b); bf16 MXU operands, f32 accumulate, M/N tiled."""
    M, K = x.shape
    Kw, N = w_bf16.shape
    assert K == Kw
    tm = _pick_tile(M, tm)
    tn = _pick_tile(N, tn)
    grid = (M // tm, N // tn)
    return pl.pallas_call(
        functools.partial(_dense_kernel, act=act),
        out_shape=jax.ShapeDtypeStruct((M, N), jnp.float32),
        grid_spec=pltpu.PrefetchScalarGridSpec(
            num_scalar_prefetch=0,
            grid=grid,
            in_specs=[
                pl.BlockSpec((tm, K), lambda i, j: (i, 0)),
                pl.BlockSpec((K, tn), lambda i, j: (0, j)),
                pl.BlockSpec((1, tn), lambda i, j: (0, j)),
            ],
            out_specs=pl.BlockSpec((tm, tn), lambda i, j: (i, j)),
        ),
        compiler_params=pltpu.CompilerParams(
            dimension_semantics=("parallel", "parallel")),
    )(x, w_bf16, b.reshape(1, N))


def _dense_res_ln_kernel(x_ref, w_ref, b_ref, r_ref, g_ref, bt_ref, o_ref):
    # y = LayerNorm(x @ W + b + residual)
    x = x_ref[...].astype(jnp.bfloat16)
    w = w_ref[...].astype(jnp.bfloat16)
    y = jnp.dot(x, w, preferred_element_type=jnp.float32)
    y = y + b_ref[...].astype(jnp.float32) + r_ref[...].astype(jnp.float32)
    mean = jnp.mean(y, axis=-1, keepdims=True)
    var = jnp.mean((y - mean) ** 2, axis=-1, keepdims=True)
    inv = jax.lax.rsqrt(var + LN_EPS)
    o_ref[...] = ((y - mean) * inv * g_ref[...] + bt_ref[...]).astype(o_ref.dtype)


def dense_res_ln(x, w_bf16, b, res, g, beta, *, tm=128):
    M, K = x.shape
    _, N = w_bf16.shape
    tm = _pick_tile(M, tm)
    return pl.pallas_call(
        _dense_res_ln_kernel,
        out_shape=jax.ShapeDtypeStruct((M, N), jnp.float32),
        grid_spec=pltpu.PrefetchScalarGridSpec(
            num_scalar_prefetch=0,
            grid=(M // tm,),
            in_specs=[
                pl.BlockSpec((tm, K), lambda i: (i, 0)),
                pl.BlockSpec((K, N), lambda i: (0, 0)),
                pl.BlockSpec((1, N), lambda i: (0, 0)),
                pl.BlockSpec((tm, N), lambda i: (i, 0)),
                pl.BlockSpec((1, N), lambda i: (0, 0)),
                pl.BlockSpec((1, N), lambda i: (0, 0)),
            ],
            out_specs=pl.BlockSpec((tm, N), lambda i: (i, 0)),
        ),
        compiler_params=pltpu.CompilerParams(
            dimension_semantics=("parallel",)),
    )(x, w_bf16, b.reshape(1, N), res, g.reshape(1, N), beta.reshape(1, N))


def _layernorm_kernel(x_ref, g_ref, b_ref, o_ref):
    x = x_ref[...].astype(jnp.float32)
    mean = jnp.mean(x, axis=-1, keepdims=True)
    var = jnp.mean((x - mean) ** 2, axis=-1, keepdims=True)
    inv = jax.lax.rsqrt(var + LN_EPS)
    o_ref[...] = ((x - mean) * inv * g_ref[...] + b_ref[...]).astype(o_ref.dtype)


def layernorm(x, g, b, *, tm=128):
    M, D = x.shape
    tm = _pick_tile(M, tm)
    return pl.pallas_call(
        _layernorm_kernel,
        out_shape=jax.ShapeDtypeStruct((M, D), x.dtype),
        grid_spec=pltpu.PrefetchScalarGridSpec(
            num_scalar_prefetch=0,
            grid=(M // tm,),
            in_specs=[
                pl.BlockSpec((tm, D), lambda i: (i, 0)),
                pl.BlockSpec((1, D), lambda i: (0, 0)),
                pl.BlockSpec((1, D), lambda i: (0, 0)),
            ],
            out_specs=pl.BlockSpec((tm, D), lambda i: (i, 0)),
        ),
        compiler_params=pltpu.CompilerParams(
            dimension_semantics=("parallel",)),
    )(x, g.reshape(1, D), b.reshape(1, D))


def _attention_kernel(qkv_ref, bias_ref, o_ref, *, heads, head_dim, hidden):
    # blocks: qkv = (1, S, 3*hidden) lane-dense, bias = (1, 1, S), out = (1, S, hidden)
    scale = 1.0 / math.sqrt(head_dim)
    bias = bias_ref[0].astype(jnp.float32)                       # (1, S)
    for h in range(heads):                                       # static unroll: one (S,S) tile live
        lo = h * head_dim
        q_h = (qkv_ref[0, :, lo:lo + head_dim] * scale).astype(jnp.bfloat16)
        k_h = qkv_ref[0, :, hidden + lo:hidden + lo + head_dim].astype(jnp.bfloat16)
        v_h = qkv_ref[0, :, 2 * hidden + lo:2 * hidden + lo + head_dim].astype(jnp.bfloat16)
        s = jnp.dot(q_h, k_h.T, preferred_element_type=jnp.float32) + bias  # (S, S)
        m = jnp.max(s, axis=-1, keepdims=True)
        p = jnp.exp(s - m)
        l = jnp.sum(p, axis=-1, keepdims=True)
        attn = (p * pl.reciprocal(l, approx=False)).astype(jnp.bfloat16)
        ctx = jnp.dot(attn, v_h, preferred_element_type=jnp.float32)        # (S, Dh)
        o_ref[0, :, lo:lo + head_dim] = ctx.astype(o_ref.dtype)


def attention(qkv, mask_bias):
    """qkv: (B, S, 3*D) lane-dense, mask_bias: (B, 1, S) additive; returns (B, S, D)."""
    B, S, threeD = qkv.shape
    D = threeD // 3
    return pl.pallas_call(
        functools.partial(_attention_kernel, heads=HEADS, head_dim=HEAD_DIM, hidden=D),
        out_shape=jax.ShapeDtypeStruct((B, S, D), jnp.float32),
        grid_spec=pltpu.PrefetchScalarGridSpec(
            num_scalar_prefetch=0,
            grid=(B,),
            in_specs=[
                pl.BlockSpec((1, S, threeD), lambda b: (b, 0, 0)),
                pl.BlockSpec((1, 1, S), lambda b: (b, 0, 0)),
            ],
            out_specs=pl.BlockSpec((1, S, D), lambda b: (b, 0, 0)),
        ),
        compiler_params=pltpu.CompilerParams(
            dimension_semantics=("parallel",)),
    )(qkv, mask_bias)


def _head_kernel(x_ref, w1_ref, b1_ref, w2_ref, b2_ref, o_ref):
    # out = tanh( tanh( tanh(x) @ W1 + b1 ) . w2 + b2 ) * 3
    x = jnp.tanh(x_ref[...].astype(jnp.float32)).astype(jnp.bfloat16)
    y = jnp.dot(x, w1_ref[...].astype(jnp.bfloat16),
                preferred_element_type=jnp.float32) + b1_ref[...]
    h = jnp.tanh(y)                                              # (B, 768) f32
    # N=1 projection as VPU mul + XLU reduce (avoids an N=1 MXU matmul / masked store)
    z = jnp.sum(h * w2_ref[...], axis=-1, keepdims=True) + b2_ref[...]
    o_ref[...] = (jnp.tanh(z) * 3.0).astype(o_ref.dtype)


def head(pooled, w1_bf16, b1, w2_row, b2):
    B, K = pooled.shape
    N1 = w1_bf16.shape[1]
    return pl.pallas_call(
        _head_kernel,
        out_shape=jax.ShapeDtypeStruct((B, 1), jnp.float32),
        grid_spec=pltpu.PrefetchScalarGridSpec(
            num_scalar_prefetch=0,
            grid=(1,),
            in_specs=[
                pl.BlockSpec((B, K), lambda i: (0, 0)),
                pl.BlockSpec((K, N1), lambda i: (0, 0)),
                pl.BlockSpec((1, N1), lambda i: (0, 0)),
                pl.BlockSpec((1, N1), lambda i: (0, 0)),
                pl.BlockSpec((1, 1), lambda i: (0, 0)),
            ],
            out_specs=pl.BlockSpec((B, 1), lambda i: (0, 0)),
        ),
        compiler_params=pltpu.CompilerParams(
            dimension_semantics=("arbitrary",)),
    )(pooled, w1_bf16, b1.reshape(1, N1), w2_row.reshape(1, N1), b2.reshape(1, 1))


# ----------------------------- parameters ----------------------------------------
def init_params(key):
    def normal(k, shape, scale=0.02):
        return scale * jax.random.normal(k, shape, dtype=jnp.float32)

    def bf16(x):
        return x.astype(jnp.bfloat16)

    keys = iter(jax.random.split(key, 16 + LAYERS * 16))
    p = {
        "word_emb": normal(next(keys), (VOCAB, HIDDEN)),
        "pos_emb": normal(next(keys), (SEQ, HIDDEN)),
        "seg_emb": normal(next(keys), (TYPE_VOCAB, HIDDEN)),
        "vis_w": bf16(normal(next(keys), (VIS_DIM, HIDDEN))),
        "vis_b": jnp.zeros((HIDDEN,), jnp.float32),
        "aud_w": bf16(normal(next(keys), (AUD_DIM, HIDDEN))),
        "aud_b": jnp.zeros((HIDDEN,), jnp.float32),
        "emb_ln_g": jnp.ones((HIDDEN,), jnp.float32),
        "emb_ln_b": jnp.zeros((HIDDEN,), jnp.float32),
        "lin_w": bf16(normal(next(keys), (HIDDEN * 3, HIDDEN))),
        "lin_b": jnp.zeros((HIDDEN,), jnp.float32),
        "lin2_wt": normal(next(keys), (1, HIDDEN)),   # transposed (768,1) weight as a row
        "lin2_b": jnp.zeros((1,), jnp.float32),
    }
    layers = []
    for _ in range(LAYERS):
        wq = normal(next(keys), (HIDDEN, HIDDEN))
        wk = normal(next(keys), (HIDDEN, HIDDEN))
        wv = normal(next(keys), (HIDDEN, HIDDEN))
        layers.append({
            "wqkv": bf16(jnp.concatenate([wq, wk, wv], axis=1)),   # (768, 2304) fused QKV
            "bqkv": jnp.zeros((3 * HIDDEN,), jnp.float32),
            "wo": bf16(normal(next(keys), (HIDDEN, HIDDEN))),
            "bo": jnp.zeros((HIDDEN,), jnp.float32),
            "ln1_g": jnp.ones((HIDDEN,), jnp.float32),
            "ln1_b": jnp.zeros((HIDDEN,), jnp.float32),
            "wi": bf16(normal(next(keys), (HIDDEN, FFN))),
            "bi": jnp.zeros((FFN,), jnp.float32),
            "wf": bf16(normal(next(keys), (FFN, HIDDEN))),
            "bf": jnp.zeros((HIDDEN,), jnp.float32),
            "ln2_g": jnp.ones((HIDDEN,), jnp.float32),
            "ln2_b": jnp.zeros((HIDDEN,), jnp.float32),
        })
    p["layers"] = layers
    return p


# ----------------------------- model forward --------------------------------------
def encoder_layer(h, mask_bias, layer):
    """5 pallas_calls: fused QKV dense, attention, out-proj+res+LN, FFN1+gelu, FFN2+res+LN."""
    B, S, D = h.shape
    x = h.reshape(B * S, D)
    qkv = dense(x, layer["wqkv"], layer["bqkv"])                  # (B*S, 3D), no transposes
    ctx = attention(qkv.reshape(B, S, 3 * D), mask_bias)          # (B, S, D) lane-dense
    h1 = dense_res_ln(ctx.reshape(B * S, D), layer["wo"], layer["bo"],
                      x, layer["ln1_g"], layer["ln1_b"])          # LN(proj(ctx)+x)
    ffn = dense(h1, layer["wi"], layer["bi"], act="gelu")         # (B*S, FFN)
    h2 = dense_res_ln(ffn, layer["wf"], layer["bf"],
                      h1, layer["ln2_g"], layer["ln2_b"])         # LN(proj(ffn)+h1)
    return h2.reshape(B, S, D)


def my_model_forward(params, input_ids, input_mask, my_mask, segment_ids,
                     visual_embedding, audio_embedding):
    B = input_ids.shape[0]

    # ---- MultimodalEmbedding ----
    txt = (jnp.take(params["word_emb"], input_ids, axis=0)
           + jnp.take(params["seg_emb"], segment_ids, axis=0))           # (B, TEXT_LEN, D)
    vis = dense(visual_embedding.reshape(B * VIS_LEN, VIS_DIM),
                params["vis_w"], params["vis_b"]).reshape(B, VIS_LEN, HIDDEN)
    aud = dense(audio_embedding.reshape(B * AUD_LEN, AUD_DIM),
                params["aud_w"], params["aud_b"]).reshape(B, AUD_LEN, HIDDEN)
    h = jnp.concatenate([txt, vis, aud], axis=1) + params["pos_emb"][None, :, :]
    # TODO(synk): exact MultimodalEmbedding internals unavailable; input_mask unused here.
    h = layernorm(h.reshape(B * SEQ, HIDDEN),
                  params["emb_ln_g"], params["emb_ln_b"]).reshape(B, SEQ, HIDDEN)

    # ---- Mul_Encoder (post-LN transformer) ----
    # additive key-mask bias precomputed once in JAX
    mask_bias = ((1.0 - my_mask.astype(jnp.float32)) * (-1e9)).reshape(B, 1, SEQ)
    for layer in params["layers"]:
        h = encoder_layer(h, mask_bias, layer)

    # ---- head: cat(tok0, tok50, tok120) -> tanh -> linear -> tanh -> linear2 -> tanh*3 ----
    pooled = jnp.concatenate([h[:, 0], h[:, 50], h[:, 120]], axis=1)     # (B, 2304)
    # TODO(synk): dropout(p=0.11) is identity at inference time.
    return head(pooled, params["lin_w"], params["lin_b"],
                params["lin2_wt"], params["lin2_b"])                     # (B, 1)


# ----------------------------------- main ------------------------------------------
if __name__ == "__main__":
    key = jax.random.PRNGKey(0)
    pkey, k1, k2, k3 = jax.random.split(key, 4)
    params = init_params(pkey)

    input_ids = jax.random.randint(k1, (BATCH, TEXT_LEN), 0, VOCAB, dtype=jnp.int32)
    segment_ids = jnp.zeros((BATCH, TEXT_LEN), dtype=jnp.int32)
    input_mask = jnp.ones((BATCH, TEXT_LEN), dtype=jnp.float32)
    my_mask = jnp.ones((BATCH, SEQ), dtype=jnp.float32)
    visual_embedding = jax.random.normal(k2, (BATCH, VIS_LEN, VIS_DIM), dtype=jnp.float32)
    audio_embedding = jax.random.normal(k3, (BATCH, AUD_LEN, AUD_DIM), dtype=jnp.float32)

    out = my_model_forward(params, input_ids, input_mask, my_mask, segment_ids,
                           visual_embedding, audio_embedding)
    out = jax.block_until_ready(out)
    assert out.shape == (BATCH, 1), out.shape
    assert bool(jnp.all(jnp.isfinite(out)))
    print("KERNEL_OK")
</pallas_src>

<mosaic_0001>
module attributes {stable_mosaic.version = 11 : i64} {
  func.func @_dense_kernel(%arg0: i32, %arg1: i32, %arg2: memref<64x512xf32, #tpu.memory_space<vmem>>, %arg3: memref<512x768xbf16, #tpu.memory_space<vmem>>, %arg4: memref<1x768xf32, #tpu.memory_space<vmem>>, %arg5: memref<64x768xf32, #tpu.memory_space<vmem>>) attributes {dimension_semantics = [#tpu.dimension_semantics<parallel>, #tpu.dimension_semantics<parallel>], iteration_bounds = array<i64: 1, 1>, scalar_prefetch = 0 : i64, scratch_operands = 0 : i64, tpu.core_type = #tpu.core_type<tc>, window_params = [{transform_indices = @transform_0, window_bounds = array<i64: 64, 512>}, {transform_indices = @transform_1, window_bounds = array<i64: 512, 768>}, {transform_indices = @transform_2, window_bounds = array<i64: 1, 768>}, {transform_indices = @transform_3, window_bounds = array<i64: 64, 768>}]} {
    %c0 = arith.constant 0 : index
    %c0_0 = arith.constant 0 : index
    %0 = vector.load %arg2[%c0, %c0_0] : memref<64x512xf32, #tpu.memory_space<vmem>>, vector<64x512xf32>
    %1 = arith.truncf %0 : vector<64x512xf32> to vector<64x512xbf16>
    %c0_1 = arith.constant 0 : index
    %c0_2 = arith.constant 0 : index
    %2 = vector.load %arg3[%c0_1, %c0_2] : memref<512x768xbf16, #tpu.memory_space<vmem>>, vector<512x768xbf16>
    %cst = arith.constant dense<0.000000e+00> : vector<64x768xf32>
    %3 = tpu.matmul %1, %2, %cst {dimension_numbers = #tpu.dot_dimension_numbers<[1], [0], [0], [1], [0, 0, 1, 1], [], []>} : vector<64x512xbf16>, vector<512x768xbf16>, vector<64x768xf32> -> vector<64x768xf32>
    %c0_3 = arith.constant 0 : index
    %c0_4 = arith.constant 0 : index
    %4 = vector.load %arg4[%c0_3, %c0_4] : memref<1x768xf32, #tpu.memory_space<vmem>>, vector<1x768xf32>
    %5 = vector.broadcast %4 : vector<1x768xf32> to vector<64x768xf32>
    %6 = arith.addf %3, %5 : vector<64x768xf32>
    %c0_5 = arith.constant 0 : index
    %c0_6 = arith.constant 0 : index
    %7 = vector.load %arg5[%c0_5, %c0_6] : memref<64x768xf32, #tpu.memory_space<vmem>>, vector<64x768xf32>
    tpu.vector_store %arg5[%c0_5, %c0_6], %6 {strides = array<i32>} : memref<64x768xf32, #tpu.memory_space<vmem>>, vector<64x768xf32>,
    return
  }
  func.func @transform_0(%arg0: i32, %arg1: i32) -> (i32, i32) {
    %c0_i32 = arith.constant 0 : i32
    %c0_i32_0 = arith.constant 0 : i32
    return %arg0, %c0_i32 : i32, i32
  }
  func.func @transform_1(%arg0: i32, %arg1: i32) -> (i32, i32) {
    %c0_i32 = arith.constant 0 : i32
    %c0_i32_0 = arith.constant 0 : i32
    return %c0_i32, %arg1 : i32, i32
  }
  func.func @transform_2(%arg0: i32, %arg1: i32) -> (i32, i32) {
    %c0_i32 = arith.constant 0 : i32
    %c0_i32_0 = arith.constant 0 : i32
    return %c0_i32, %arg1 : i32, i32
  }
  func.func @transform_3(%arg0: i32, %arg1: i32) -> (i32, i32) {
    %c0_i32 = arith.constant 0 : i32
    return %arg0, %arg1 : i32, i32
  }
}

</mosaic_0001>

<llo_original>
// kernel: tpu_custom_call.1
$region0: #{tpu_custom_call.1}
  #allocation0 [shape = 'u32[]', space=smem, size = 0x4, offset = 0x4, fixed_abs, tag = 'smem constant byte address 0x4 - core index']
  #allocation1 [shape = 'u32[72,128]{1,0:T(1,128)}', space=vmem, size = 0x9000, scoped, tag = 'internal scratch']
  %s0 = inlined_call_operand.hbm [shape: f32[64,512], index: 0, kind: input, shape index: {}]
  %s1 = inlined_call_operand.hbm [shape: bf16[512,768], index: 1, kind: input, shape index: {}]
  %s2 = inlined_call_operand.hbm [shape: f32[1,768], index: 2, kind: input, shape index: {}]
  %s3 = inlined_call_operand.hbm [shape: f32[64,768], index: 3, kind: output, shape index: {}]
  %s4 = sld [smem:[#allocation0]]
  $region34: #{tpu_custom_call.1} parent=0
    _
  %s6 = ssub.s32 1, %s4
  %s7 = scalar_select 0, %s6, %s4
  $region1: #{tpu_custom_call.1} parent=0
    #allocation2 [shape = 'u8[131072]{0}', space=vmem, size = 0x20000, scoped, tag = 'input window, operand 0, single buffered']
    #allocation3 [shape = 's32[1]{0}', space=sflag, size = 0x4, scoped, tag = 'scoped memory for tpu_custom_call.1']
    #allocation4 [shape = 's32[1]{0}', space=sflag, size = 0x4, scoped, tag = 'scoped memory for tpu_custom_call.1']
    #allocation5 [shape = 'u8[786432]{0}', space=vmem, size = 0xc0000, scoped, tag = 'input window, operand 1, single buffered']
    #allocation6 [shape = 's32[1]{0}', space=sflag, size = 0x4, scoped, tag = 'scoped memory for tpu_custom_call.1']
    #allocation7 [shape = 'u8[3072]{0}', space=vmem, size = 0xc00, scoped, tag = 'input window, operand 2, single buffered']
    #allocation8 [shape = 'u8[196608]{0}', space=vmem, size = 0x30000, scoped, tag = 'output window, operand 0, single buffered']
    %8 = vsyncpa [#allocation3], 0
    %9 = vsyncpa [#allocation6], 0
    %10 = vsyncpa [#allocation4], 0
    // Predicated region
    $region2: #{tpu_custom_call.1} parent=1 // pred_check
      _
    $region3: #{tpu_custom_call.1} parent=1 // pred_check_branch
      %12 = sbr.rel (0) target = $region5
    $region4: #{tpu_custom_call.1} parent=1 // pred_region
      %14 = vsyncadd [#allocation3], 0
      %s15 = sshll.u32 %s0, 4
      %s16 = int_to_ptr.hbm [resolvable:$true] %s15
      %s17 = sshll.u32 [#allocation2], 4
      %s18 = int_to_ptr.vmem [resolvable:$true] %s17
      %23 = dma.hbm_to_vmem [thread:$0]  %s16, 4096, %s18, [#allocation3], 512, 512, 32
    $region5: #{tpu_custom_call.1} parent=1 // pred_fallthru
      _
    // Predicated region
    $region6: #{tpu_custom_call.1} parent=1 // pred_check
      _
    $region7: #{tpu_custom_call.1} parent=1 // pred_check_branch
      %25 = sbr.rel (0) target = $region9
    $region8: #{tpu_custom_call.1} parent=1 // pred_region
      %27 = vsyncadd [#allocation6], 0
      %s28 = sshll.u32 %s1, 4
      %s29 = int_to_ptr.hbm [resolvable:$true] %s28
      %s30 = sshll.u32 [#allocation5], 4
      %s31 = int_to_ptr.vmem [resolvable:$true] %s30
      %36 = dma.hbm_to_vmem [thread:$0]  %s29, 24576, %s31, [#allocation6], 384, 384, 24
    $region9: #{tpu_custom_call.1} parent=1 // pred_fallthru
      _
    // Predicated region
    $region10: #{tpu_custom_call.1} parent=1 // pred_check
      _
    $region11: #{tpu_custom_call.1} parent=1 // pred_check_branch
      %38 = sbr.rel (0) target = $region13
    $region12: #{tpu_custom_call.1} parent=1 // pred_region
      %40 = vsyncadd [#allocation6], 0
      %s42 = sshll.u32 %s2, 4
      %s43 = int_to_ptr.hbm [resolvable:$true] %s42
      %s44 = sshll.u32 [#allocation7], 4
      %s45 = int_to_ptr.vmem [resolvable:$true] %s44
      %47 = dma.hbm_to_vmem [thread:$0]  %s43, 96, %s45, [#allocation6]
    $region13: #{tpu_custom_call.1} parent=1 // pred_fallthru
      _
    // Predicated region
    $region14: #{tpu_custom_call.1} parent=1 // pred_check
      _
    $region15: #{tpu_custom_call.1} parent=1 // pred_check_branch
      %49 = sbr.rel (0) target = $region17
    $region16: #{tpu_custom_call.1} parent=1 // pred_region
      %51 = dma.done [#allocation3], 4096
    $region17: #{tpu_custom_call.1} parent=1 // pred_fallthru
      _
    // Predicated region
    $region18: #{tpu_custom_call.1} parent=1 // pred_check
      _
    $region19: #{tpu_custom_call.1} parent=1 // pred_check_branch
      %53 = sbr.rel (0) target = $region21
    $region20: #{tpu_custom_call.1} parent=1 // pred_region
      %55 = dma.done [#allocation6], 24576
    $region21: #{tpu_custom_call.1} parent=1 // pred_fallthru
      _
    // Predicated region
    $region22: #{tpu_custom_call.1} parent=1 // pred_check
      _
    $region23: #{tpu_custom_call.1} parent=1 // pred_check_branch
      %57 = sbr.rel (0) target = $region25
    $region24: #{tpu_custom_call.1} parent=1 // pred_region
      %59 = dma.done [#allocation6], 96
    $region25: #{tpu_custom_call.1} parent=1 // pred_fallthru
      _
    %v60 = vld [vmem:[#allocation2] sm:$0xff]
    %v61 = vld [vmem:[#allocation2 + $0x8] sm:$0xff]
    %v62 = vld [vmem:[#allocation2 + $0x10] sm:$0xff]
    %v63 = vld [vmem:[#allocation2 + $0x18] sm:$0xff]
    %v64 = vld [vmem:[#allocation2 + $0x20] sm:$0xff]
    %v65 = vld [vmem:[#allocation2 + $0x28] sm:$0xff]
    %v66 = vld [vmem:[#allocation2 + $0x30] sm:$0xff]
    %v67 = vld [vmem:[#allocation2 + $0x38] sm:$0xff]
    %v68 = vld [vmem:[#allocation2 + $0x40] sm:$0xff]
    %v69 = vld [vmem:[#allocation2 + $0x48] sm:$0xff]
    %v70 = vld [vmem:[#allocation2 + $0x50] sm:$0xff]
    %v71 = vld [vmem:[#allocation2 + $0x58] sm:$0xff]
    %v72 = vld [vmem:[#allocation2 + $0x60] sm:$0xff]
    %v73 = vld [vmem:[#allocation2 + $0x68] sm:$0xff]
    %v74 = vld [vmem:[#allocation2 + $0x70] sm:$0xff]
    %v75 = vld [vmem:[#allocation2 + $0x78] sm:$0xff]
    %v76 = vld [vmem:[#allocation2 + $0x80] sm:$0xff]
    %v77 = vld [vmem:[#allocation2 + $0x88] sm:$0xff]
    %v78 = vld [vmem:[#allocation2 + $0x90] sm:$0xff]
    %v79 = vld [vmem:[#allocation2 + $0x98] sm:$0xff]
    %v80 = vld [vmem:[#allocation2 + $0xa0] sm:$0xff]
    %v81 = vld [vmem:[#allocation2 + $0xa8] sm:$0xff]
    %v82 = vld [vmem:[#allocation2 + $0xb0] sm:$0xff]
    %v83 = vld [vmem:[#allocation2 + $0xb8] sm:$0xff]
    %v84 = vld [vmem:[#allocation2 + $0xc0] sm:$0xff]
    %v85 = vld [vmem:[#allocation2 + $0xc8] sm:$0xff]
    %v86 = vld [vmem:[#allocation2 + $0xd0] sm:$0xff]
    %v87 = vld [vmem:[#allocation2 + $0xd8] sm:$0xff]
    %v88 = vld [vmem:[#allocation2 + $0xe0] sm:$0xff]
    %v89 = vld [vmem:[#allocation2 + $0xe8] sm:$0xff]
    %v90 = vld [vmem:[#allocation2 + $0xf0] sm:$0xff]
    %v91 = vld [vmem:[#allocation2 + $0xf8] sm:$0xff]
    %v92 = vpack.c.bf16 %v64, %v60
    %v93 = vpack.c.bf16 %v65, %v61
    %v94 = vpack.c.bf16 %v66, %v62
    %v95 = vpack.c.bf16 %v67, %v63
    %v96 = vpack.c.bf16 %v72, %v68
    %v97 = vpack.c.bf16 %v73, %v69
    %v98 = vpack.c.bf16 %v74, %v70
    %v99 = vpack.c.bf16 %v75, %v71
    %v100 = vpack.c.bf16 %v80, %v76
    %v101 = vpack.c.bf16 %v81, %v77
    %v102 = vpack.c.bf16 %v82, %v78
    %v103 = vpack.c.bf16 %v83, %v79
    %v104 = vpack.c.bf16 %v88, %v84
    %v105 = vpack.c.bf16 %v89, %v85
    %v106 = vpack.c.bf16 %v90, %v86
    %v107 = vpack.c.bf16 %v91, %v87
    %v108 = vld [vmem:[#allocation5] sm:$0xff]
    %v109 = vld [vmem:[#allocation5 + $0x8] sm:$0xff]
    %v110 = vld [vmem:[#allocation5 + $0x10] sm:$0xff]
    %v111 = vld [vmem:[#allocation5 + $0x18] sm:$0xff]
    %v112 = vld [vmem:[#allocation5 + $0x20] sm:$0xff]
    %v113 = vld [vmem:[#allocation5 + $0x28] sm:$0xff]
    %v114 = vld [vmem:[#allocation5 + $0x30] sm:$0xff]
    %v115 = vld [vmem:[#allocation5 + $0x38] sm:$0xff]
    %v116 = vld [vmem:[#allocation5 + $0x40] sm:$0xff]
    %v117 = vld [vmem:[#allocation5 + $0x48] sm:$0xff]
    %v118 = vld [vmem:[#allocation5 + $0x50] sm:$0xff]
    %v119 = vld [vmem:[#allocation5 + $0x58] sm:$0xff]
    %v120 = vld [vmem:[#allocation5 + $0x60] sm:$0xff]
    %v121 = vld [vmem:[#allocation5 + $0x68] sm:$0xff]
    %v122 = vld [vmem:[#allocation5 + $0x70] sm:$0xff]
    %v123 = vld [vmem:[#allocation5 + $0x78] sm:$0xff]
    %v124 = vld [vmem:[#allocation5 + $0x80] sm:$0xff]
    %v125 = vld [vmem:[#allocation5 + $0x88] sm:$0xff]
    %v126 = vld [vmem:[#allocation5 + $0x90] sm:$0xff]
    %v127 = vld [vmem:[#allocation5 + $0x98] sm:$0xff]
    %v128 = vld [vmem:[#allocation5 + $0xa0] sm:$0xff]
    %v129 = vld [vmem:[#allocation5 + $0xa8] sm:$0xff]
    %v130 = vld [vmem:[#allocation5 + $0xb0] sm:$0xff]
    %v131 = vld [vmem:[#allocation5 + $0xb8] sm:$0xff]
    %v132 = vld [vmem:[#allocation5 + $0xc0] sm:$0xff]
    %v133 = vld [vmem:[#allocation5 + $0xc8] sm:$0xff]
    %v134 = vld [vmem:[#allocation5 + $0xd0] sm:$0xff]
    %v135 = vld [vmem:[#allocation5 + $0xd8] sm:$0xff]
    %v136 = vld [vmem:[#allocation5 + $0xe0] sm:$0xff]
    %v137 = vld [vmem:[#allocation5 + $0xe8] sm:$0xff]
    %v138 = vld [vmem:[#allocation5 + $0xf0] sm:$0xff]
    %v139 = vld [vmem:[#allocation5 + $0xf8] sm:$0xff]
    %v140 = vld [vmem:[#allocation5 + $0x100] sm:$0xff]
    %v141 = vld [vmem:[#allocation5 + $0x108] sm:$0xff]
    %v142 = vld [vmem:[#allocation5 + $0x110] sm:$0xff]
    %v143 = vld [vmem:[#allocation5 + $0x118] sm:$0xff]
    %v144 = vld [vmem:[#allocation5 + $0x120] sm:$0xff]
    %v145 = vld [vmem:[#allocation5 + $0x128] sm:$0xff]
    %v146 = vld [vmem:[#allocation5 + $0x130] sm:$0xff]
    %v147 = vld [vmem:[#allocation5 + $0x138] sm:$0xff]
    %v148 = vld [vmem:[#allocation5 + $0x140] sm:$0xff]
    %v149 = vld [vmem:[#allocation5 + $0x148] sm:$0xff]
    %v150 = vld [vmem:[#allocation5 + $0x150] sm:$0xff]
    %v151 = vld [vmem:[#allocation5 + $0x158] sm:$0xff]
    %v152 = vld [vmem:[#allocation5 + $0x160] sm:$0xff]
    %v153 = vld [vmem:[#allocation5 + $0x168] sm:$0xff]
    %v154 = vld [vmem:[#allocation5 + $0x170] sm:$0xff]
    %v155 = vld [vmem:[#allocation5 + $0x178] sm:$0xff]
    %v156 = vld [vmem:[#allocation5 + $0x180] sm:$0xff]
    %v157 = vld [vmem:[#allocation5 + $0x188] sm:$0xff]
    %v158 = vld [vmem:[#allocation5 + $0x190] sm:$0xff]
    %v159 = vld [vmem:[#allocation5 + $0x198] sm:$0xff]
    %v160 = vld [vmem:[#allocation5 + $0x1a0] sm:$0xff]
    %v161 = vld [vmem:[#allocation5 + $0x1a8] sm:$0xff]
    %v162 = vld [vmem:[#allocation5 + $0x1b0] sm:$0xff]
    %v163 = vld [vmem:[#allocation5 + $0x1b8] sm:$0xff]
    %v164 = vld [vmem:[#allocation5 + $0x1c0] sm:$0xff]
    %v165 = vld [vmem:[#allocation5 + $0x1c8] sm:$0xff]
    %v166 = vld [vmem:[#allocation5 + $0x1d0] sm:$0xff]
    %v167 = vld [vmem:[#allocation5 + $0x1d8] sm:$0xff]
    %v168 = vld [vmem:[#allocation5 + $0x1e0] sm:$0xff]
    %v169 = vld [vmem:[#allocation5 + $0x1e8] sm:$0xff]
    %v170 = vld [vmem:[#allocation5 + $0x1f0] sm:$0xff]
    %v171 = vld [vmem:[#allocation5 + $0x1f8] sm:$0xff]
    %v172 = vld [vmem:[#allocation5 + $0x200] sm:$0xff]
    %v173 = vld [vmem:[#allocation5 + $0x208] sm:$0xff]
    %v174 = vld [vmem:[#allocation5 + $0x210] sm:$0xff]
    %v175 = vld [vmem:[#allocation5 + $0x218] sm:$0xff]
    %v176 = vld [vmem:[#allocation5 + $0x220] sm:$0xff]
    %v177 = vld [vmem:[#allocation5 + $0x228] sm:$0xff]
    %v178 = vld [vmem:[#allocation5 + $0x230] sm:$0xff]
    %v179 = vld [vmem:[#allocation5 + $0x238] sm:$0xff]
    %v180 = vld [vmem:[#allocation5 + $0x240] sm:$0xff]
    %v181 = vld [vmem:[#allocation5 + $0x248] sm:$0xff]
    %v182 = vld [vmem:[#allocation5 + $0x250] sm:$0xff]
    %v183 = vld [vmem:[#allocation5 + $0x258] sm:$0xff]
    %v184 = vld [vmem:[#allocation5 + $0x260] sm:$0xff]
    %v185 = vld [vmem:[#allocation5 + $0x268] sm:$0xff]
    %v186 = vld [vmem:[#allocation5 + $0x270] sm:$0xff]
    %v187 = vld [vmem:[#allocation5 + $0x278] sm:$0xff]
    %v188 = vld [vmem:[#allocation5 + $0x280] sm:$0xff]
    %v189 = vld [vmem:[#allocation5 + $0x288] sm:$0xff]
    %v190 = vld [vmem:[#allocation5 + $0x290] sm:$0xff]
    %v191 = vld [vmem:[#allocation5 + $0x298] sm:$0xff]
    %v192 = vld [vmem:[#allocation5 + $0x2a0] sm:$0xff]
    %v193 = vld [vmem:[#allocation5 + $0x2a8] sm:$0xff]
    %v194 = vld [vmem:[#allocation5 + $0x2b0] sm:$0xff]
    %v195 = vld [vmem:[#allocation5 + $0x2b8] sm:$0xff]
    %v196 = vld [vmem:[#allocation5 + $0x2c0] sm:$0xff]
    %v197 = vld [vmem:[#allocation5 + $0x2c8] sm:$0xff]
    %v198 = vld [vmem:[#allocation5 + $0x2d0] sm:$0xff]
    %v199 = vld [vmem:[#allocation5 + $0x2d8] sm:$0xff]
    %v200 = vld [vmem:[#allocation5 + $0x2e0] sm:$0xff]
    %v201 = vld [vmem:[#allocation5 + $0x2e8] sm:$0xff]
    %v202 = vld [vmem:[#allocation5 + $0x2f0] sm:$0xff]
    %v203 = vld [vmem:[#allocation5 + $0x2f8] sm:$0xff]
    %v204 = vld [vmem:[#allocation5 + $0x300] sm:$0xff]
    %v205 = vld [vmem:[#allocation5 + $0x308] sm:$0xff]
    %v206 = vld [vmem:[#allocation5 + $0x310] sm:$0xff]
    %v207 = vld [vmem:[#allocation5 + $0x318] sm:$0xff]
    %v208 = vld [vmem:[#allocation5 + $0x320] sm:$0xff]
    %v209 = vld [vmem:[#allocation5 + $0x328] sm:$0xff]
    %v210 = vld [vmem:[#allocation5 + $0x330] sm:$0xff]
    %v211 = vld [vmem:[#allocation5 + $0x338] sm:$0xff]
    %v212 = vld [vmem:[#allocation5 + $0x340] sm:$0xff]
    %v213 = vld [vmem:[#allocation5 + $0x348] sm:$0xff]
    %v214 = vld [vmem:[#allocation5 + $0x350] sm:$0xff]
    %v215 = vld [vmem:[#allocation5 + $0x358] sm:$0xff]
    %v216 = vld [vmem:[#allocation5 + $0x360] sm:$0xff]
    %v217 = vld [vmem:[#allocation5 + $0x368] sm:$0xff]
    %v218 = vld [vmem:[#allocation5 + $0x370] sm:$0xff]
    %v219 = vld [vmem:[#allocation5 + $0x378] sm:$0xff]
    %v220 = vld [vmem:[#allocation5 + $0x380] sm:$0xff]
    %v221 = vld [vmem:[#allocation5 + $0x388] sm:$0xff]
    %v222 = vld [vmem:[#allocation5 + $0x390] sm:$0xff]
    %v223 = vld [vmem:[#allocation5 + $0x398] sm:$0xff]
    %v224 = vld [vmem:[#allocation5 + $0x3a0] sm:$0xff]
    %v225 = vld [vmem:[#allocation5 + $0x3a8] sm:$0xff]
    %v226 = vld [vmem:[#allocation5 + $0x3b0] sm:$0xff]
    %v227 = vld [vmem:[#allocation5 + $0x3b8] sm:$0xff]
    %v228 = vld [vmem:[#allocation5 + $0x3c0] sm:$0xff]
    %v229 = vld [vmem:[#allocation5 + $0x3c8] sm:$0xff]
    %v230 = vld [vmem:[#allocation5 + $0x3d0] sm:$0xff]
    %v231 = vld [vmem:[#allocation5 + $0x3d8] sm:$0xff]
    %v232 = vld [vmem:[#allocation5 + $0x3e0] sm:$0xff]
    %v233 = vld [vmem:[#allocation5 + $0x3e8] sm:$0xff]
    %v234 = vld [vmem:[#allocation5 + $0x3f0] sm:$0xff]
    %v235 = vld [vmem:[#allocation5 + $0x3f8] sm:$0xff]
    %v236 = vld [vmem:[#allocation5 + $0x400] sm:$0xff]
    %v237 = vld [vmem:[#allocation5 + $0x408] sm:$0xff]
    %v238 = vld [vmem:[#allocation5 + $0x410] sm:$0xff]
    %v239 = vld [vmem:[#allocation5 + $0x418] sm:$0xff]
    %v240 = vld [vmem:[#allocation5 + $0x420] sm:$0xff]
    %v241 = vld [vmem:[#allocation5 + $0x428] sm:$0xff]
    %v242 = vld [vmem:[#allocation5 + $0x430] sm:$0xff]
    %v243 = vld [vmem:[#allocation5 + $0x438] sm:$0xff]
    %v244 = vld [vmem:[#allocation5 + $0x440] sm:$0xff]
    %v245 = vld [vmem:[#allocation5 + $0x448] sm:$0xff]
    %v246 = vld [vmem:[#allocation5 + $0x450] sm:$0xff]
    %v247 = vld [vmem:[#allocation5 + $0x458] sm:$0xff]
    %v248 = vld [vmem:[#allocation5 + $0x460] sm:$0xff]
    %v249 = vld [vmem:[#allocation5 + $0x468] sm:$0xff]
    %v250 = vld [vmem:[#allocation5 + $0x470] sm:$0xff]
    %v251 = vld [vmem:[#allocation5 + $0x478] sm:$0xff]
    %v252 = vld [vmem:[#allocation5 + $0x480] sm:$0xff]
    %v253 = vld [vmem:[#allocation5 + $0x488] sm:$0xff]
    %v254 = vld [vmem:[#allocation5 + $0x490] sm:$0xff]
    %v255 = vld [vmem:[#allocation5 + $0x498] sm:$0xff]
    %v256 = vld [vmem:[#allocation5 + $0x4a0] sm:$0xff]
    %v257 = vld [vmem:[#allocation5 + $0x4a8] sm:$0xff]
    %v258 = vld [vmem:[#allocation5 + $0x4b0] sm:$0xff]
    %v259 = vld [vmem:[#allocation5 + $0x4b8] sm:$0xff]
    %v260 = vld [vmem:[#allocation5 + $0x4c0] sm:$0xff]
    %v261 = vld [vmem:[#allocation5 + $0x4c8] sm:$0xff]
    %v262 = vld [vmem:[#allocation5 + $0x4d0] sm:$0xff]
    %v263 = vld [vmem:[#allocation5 + $0x4d8] sm:$0xff]
    %v264 = vld [vmem:[#allocation5 + $0x4e0] sm:$0xff]
    %v265 = vld [vmem:[#allocation5 + $0x4e8] sm:$0xff]
    %v266 = vld [vmem:[#allocation5 + $0x4f0] sm:$0xff]
    %v267 = vld [vmem:[#allocation5 + $0x4f8] sm:$0xff]
    %v268 = vld [vmem:[#allocation5 + $0x500] sm:$0xff]
    %v269 = vld [vmem:[#allocation5 + $0x508] sm:$0xff]
    %v270 = vld [vmem:[#allocation5 + $0x510] sm:$0xff]
    %v271 = vld [vmem:[#allocation5 + $0x518] sm:$0xff]
    %v272 = vld [vmem:[#allocation5 + $0x520] sm:$0xff]
    %v273 = vld [vmem:[#allocation5 + $0x528] sm:$0xff]
    %v274 = vld [vmem:[#allocation5 + $0x530] sm:$0xff]
    %v275 = vld [vmem:[#allocation5 + $0x538] sm:$0xff]
    %v276 = vld [vmem:[#allocation5 + $0x540] sm:$0xff]
    %v277 = vld [vmem:[#allocation5 + $0x548] sm:$0xff]
    %v278 = vld [vmem:[#allocation5 + $0x550] sm:$0xff]
    %v279 = vld [vmem:[#allocation5 + $0x558] sm:$0xff]
    %v280 = vld [vmem:[#allocation5 + $0x560] sm:$0xff]
    %v281 = vld [vmem:[#allocation5 + $0x568] sm:$0xff]
    %v282 = vld [vmem:[#allocation5 + $0x570] sm:$0xff]
    %v283 = vld [vmem:[#allocation5 + $0x578] sm:$0xff]
    %v284 = vld [vmem:[#allocation5 + $0x580] sm:$0xff]
    %v285 = vld [vmem:[#allocation5 + $0x588] sm:$0xff]
    %v286 = vld [vmem:[#allocation5 + $0x590] sm:$0xff]
    %v287 = vld [vmem:[#allocation5 + $0x598] sm:$0xff]
    %v288 = vld [vmem:[#allocation5 + $0x5a0] sm:$0xff]
    %v289 = vld [vmem:[#allocation5 + $0x5a8] sm:$0xff]
    %v290 = vld [vmem:[#allocation5 + $0x5b0] sm:$0xff]
    %v291 = vld [vmem:[#allocation5 + $0x5b8] sm:$0xff]
    %v292 = vld [vmem:[#allocation5 + $0x5c0] sm:$0xff]
    %v293 = vld [vmem:[#allocation5 + $0x5c8] sm:$0xff]
    %v294 = vld [vmem:[#allocation5 + $0x5d0] sm:$0xff]
    %v295 = vld [vmem:[#allocation5 + $0x5d8] sm:$0xff]
    %v296 = vld [vmem:[#allocation5 + $0x5e0] sm:$0xff]
    %v297 = vld [vmem:[#allocation5 + $0x5e8] sm:$0xff]
    %v298 = vld [vmem:[#allocation5 + $0x5f0] sm:$0xff]
    %v299 = vld [vmem:[#allocation5 + $0x5f8] sm:$0xff]
    %v300 = vld [vmem:[#allocation7] sm:$0x3f]
    %v302 = vperm.slane %v300, 0
    %v303 = vperm.slane %v300, 1
    %v304 = vperm.slane %v300, 2
    %v305 = vperm.slane %v300, 3
    %v306 = vperm.slane %v300, 4
    %v307 = vperm.slane %v300, 5
    %v506 = vunpack.c.l.b16 %v108
    %v507 = vunpack.c.h.b16 %v108
    %v508 = vunpack.c.l.b16 %v109
    %v509 = vunpack.c.h.b16 %v109
    %v510 = vunpack.c.l.b16 %v110
    %v511 = vunpack.c.h.b16 %v110
    %v512 = vunpack.c.l.b16 %v111
    %v513 = vunpack.c.h.b16 %v111
    %v514 = vunpack.c.l.b16 %v112
    %v515 = vunpack.c.h.b16 %v112
    %v516 = vunpack.c.l.b16 %v113
    %v517 = vunpack.c.h.b16 %v113
    %v518 = vunpack.c.l.b16 %v114
    %v519 = vunpack.c.h.b16 %v114
    %v520 = vunpack.c.l.b16 %v115
    %v521 = vunpack.c.h.b16 %v115
    %v522 = vunpack.c.l.b16 %v116
    %v523 = vunpack.c.h.b16 %v116
    %v524 = vunpack.c.l.b16 %v117
    %v525 = vunpack.c.h.b16 %v117
    %v526 = vunpack.c.l.b16 %v118
    %v527 = vunpack.c.h.b16 %v118
    %v528 = vunpack.c.l.b16 %v119
    %v529 = vunpack.c.h.b16 %v119
    %v530 = vunpack.c.l.b16 %v120
    %v531 = vunpack.c.h.b16 %v120
    %v532 = vunpack.c.l.b16 %v121
    %v533 = vunpack.c.h.b16 %v121
    %v534 = vunpack.c.l.b16 %v122
    %v535 = vunpack.c.h.b16 %v122
    %v536 = vunpack.c.l.b16 %v123
    %v537 = vunpack.c.h.b16 %v123
    %v538 = vunpack.c.l.b16 %v124
    %v539 = vunpack.c.h.b16 %v124
    %v540 = vunpack.c.l.b16 %v125
    %v541 = vunpack.c.h.b16 %v125
    %v542 = vunpack.c.l.b16 %v126
    %v543 = vunpack.c.h.b16 %v126
    %v544 = vunpack.c.l.b16 %v127
    %v545 = vunpack.c.h.b16 %v127
    %v546 = vunpack.c.l.b16 %v128
    %v547 = vunpack.c.h.b16 %v128
    %v548 = vunpack.c.l.b16 %v129
    %v549 = vunpack.c.h.b16 %v129
    %v550 = vunpack.c.l.b16 %v130
    %v551 = vunpack.c.h.b16 %v130
    %v552 = vunpack.c.l.b16 %v131
    %v553 = vunpack.c.h.b16 %v131
    %v554 = vunpack.c.l.b16 %v132
    %v555 = vunpack.c.h.b16 %v132
    %v556 = vunpack.c.l.b16 %v133
    %v557 = vunpack.c.h.b16 %v133
    %v558 = vunpack.c.l.b16 %v134
    %v559 = vunpack.c.h.b16 %v134
    %v560 = vunpack.c.l.b16 %v135
    %v561 = vunpack.c.h.b16 %v135
    %v562 = vunpack.c.l.b16 %v136
    %v563 = vunpack.c.h.b16 %v136
    %v564 = vunpack.c.l.b16 %v137
    %v565 = vunpack.c.h.b16 %v137
    %v566 = vunpack.c.l.b16 %v138
    %v567 = vunpack.c.h.b16 %v138
    %v568 = vunpack.c.l.b16 %v139
    %v569 = vunpack.c.h.b16 %v139
    %v570 = vunpack.c.l.b16 %v140
    %v571 = vunpack.c.h.b16 %v140
    %v572 = vunpack.c.l.b16 %v141
    %v573 = vunpack.c.h.b16 %v141
    %v574 = vunpack.c.l.b16 %v142
    %v575 = vunpack.c.h.b16 %v142
    %v576 = vunpack.c.l.b16 %v143
    %v577 = vunpack.c.h.b16 %v143
    %v578 = vunpack.c.l.b16 %v144
    %v579 = vunpack.c.h.b16 %v144
    %v580 = vunpack.c.l.b16 %v145
    %v581 = vunpack.c.h.b16 %v145
    %v582 = vunpack.c.l.b16 %v146
    %v583 = vunpack.c.h.b16 %v146
    %v584 = vunpack.c.l.b16 %v147
    %v585 = vunpack.c.h.b16 %v147
    %v586 = vunpack.c.l.b16 %v148
    %v587 = vunpack.c.h.b16 %v148
    %v588 = vunpack.c.l.b16 %v149
    %v589 = vunpack.c.h.b16 %v149
    %v590 = vunpack.c.l.b16 %v150
    %v591 = vunpack.c.h.b16 %v150
    %v592 = vunpack.c.l.b16 %v151
    %v593 = vunpack.c.h.b16 %v151
    %v594 = vunpack.c.l.b16 %v152
    %v595 = vunpack.c.h.b16 %v152
    %v596 = vunpack.c.l.b16 %v153
    %v597 = vunpack.c.h.b16 %v153
    %v598 = vunpack.c.l.b16 %v154
    %v599 = vunpack.c.h.b16 %v154
    %v600 = vunpack.c.l.b16 %v155
    %v601 = vunpack.c.h.b16 %v155
    %v602 = vunpack.c.l.b16 %v156
    %v603 = vunpack.c.h.b16 %v156
    %v604 = vunpack.c.l.b16 %v157
    %v605 = vunpack.c.h.b16 %v157
    %v606 = vunpack.c.l.b16 %v158
    %v607 = vunpack.c.h.b16 %v158
    %v608 = vunpack.c.l.b16 %v159
    %v609 = vunpack.c.h.b16 %v159
    %v610 = vunpack.c.l.b16 %v160
    %v611 = vunpack.c.h.b16 %v160
    %v612 = vunpack.c.l.b16 %v161
    %v613 = vunpack.c.h.b16 %v161
    %v614 = vunpack.c.l.b16 %v162
    %v615 = vunpack.c.h.b16 %v162
    %v616 = vunpack.c.l.b16 %v163
    %v617 = vunpack.c.h.b16 %v163
    %v618 = vunpack.c.l.b16 %v164
    %v619 = vunpack.c.h.b16 %v164
    %v620 = vunpack.c.l.b16 %v165
    %v621 = vunpack.c.h.b16 %v165
    %v622 = vunpack.c.l.b16 %v166
    %v623 = vunpack.c.h.b16 %v166
    %v624 = vunpack.c.l.b16 %v167
    %v625 = vunpack.c.h.b16 %v167
    %v626 = vunpack.c.l.b16 %v168
    %v627 = vunpack.c.h.b16 %v168
    %v628 = vunpack.c.l.b16 %v169
    %v629 = vunpack.c.h.b16 %v169
    %v630 = vunpack.c.l.b16 %v170
    %v631 = vunpack.c.h.b16 %v170
    %v632 = vunpack.c.l.b16 %v171
    %v633 = vunpack.c.h.b16 %v171
    %v634 = vunpack.c.l.b16 %v172
    %v635 = vunpack.c.h.b16 %v172
    %v636 = vunpack.c.l.b16 %v173
    %v637 = vunpack.c.h.b16 %v173
    %v638 = vunpack.c.l.b16 %v174
    %v639 = vunpack.c.h.b16 %v174
    %v640 = vunpack.c.l.b16 %v175
    %v641 = vunpack.c.h.b16 %v175
    %v642 = vunpack.c.l.b16 %v176
    %v643 = vunpack.c.h.b16 %v176
    %v644 = vunpack.c.l.b16 %v177
    %v645 = vunpack.c.h.b16 %v177
    %v646 = vunpack.c.l.b16 %v178
    %v647 = vunpack.c.h.b16 %v178
    %v648 = vunpack.c.l.b16 %v179
    %v649 = vunpack.c.h.b16 %v179
    %v650 = vunpack.c.l.b16 %v180
    %v651 = vunpack.c.h.b16 %v180
    %v652 = vunpack.c.l.b16 %v181
    %v653 = vunpack.c.h.b16 %v181
    %v654 = vunpack.c.l.b16 %v182
    %v655 = vunpack.c.h.b16 %v182
    %v656 = vunpack.c.l.b16 %v183
    %v657 = vunpack.c.h.b16 %v183
    %v658 = vunpack.c.l.b16 %v184
    %v659 = vunpack.c.h.b16 %v184
    %v660 = vunpack.c.l.b16 %v185
    %v661 = vunpack.c.h.b16 %v185
    %v662 = vunpack.c.l.b16 %v186
    %v663 = vunpack.c.h.b16 %v186
    %v664 = vunpack.c.l.b16 %v187
    %v665 = vunpack.c.h.b16 %v187
    %v666 = vunpack.c.l.b16 %v188
    %v667 = vunpack.c.h.b16 %v188
    %v668 = vunpack.c.l.b16 %v189
    %v669 = vunpack.c.h.b16 %v189
    %v670 = vunpack.c.l.b16 %v190
    %v671 = vunpack.c.h.b16 %v190
    %v672 = vunpack.c.l.b16 %v191
    %v673 = vunpack.c.h.b16 %v191
    %v674 = vunpack.c.l.b16 %v192
    %v675 = vunpack.c.h.b16 %v192
    %v676 = vunpack.c.l.b16 %v193
    %v677 = vunpack.c.h.b16 %v193
    %v678 = vunpack.c.l.b16 %v194
    %v679 = vunpack.c.h.b16 %v194
    %v680 = vunpack.c.l.b16 %v195
    %v681 = vunpack.c.h.b16 %v195
    %v682 = vunpack.c.l.b16 %v196
    %v683 = vunpack.c.h.b16 %v196
    %v684 = vunpack.c.l.b16 %v197
    %v685 = vunpack.c.h.b16 %v197
    %v686 = vunpack.c.l.b16 %v198
    %v687 = vunpack.c.h.b16 %v198
    %v688 = vunpack.c.l.b16 %v199
    %v689 = vunpack.c.h.b16 %v199
    %v690 = vunpack.c.l.b16 %v200
    %v691 = vunpack.c.h.b16 %v200
    %v692 = vunpack.c.l.b16 %v201
    %v693 = vunpack.c.h.b16 %v201
    %v694 = vunpack.c.l.b16 %v202
    %v695 = vunpack.c.h.b16 %v202
    %v696 = vunpack.c.l.b16 %v203
    %v697 = vunpack.c.h.b16 %v203
    %v698 = vunpack.c.l.b16 %v204
    %v699 = vunpack.c.h.b16 %v204
    %v700 = vunpack.c.l.b16 %v205
    %v701 = vunpack.c.h.b16 %v205
    %v702 = vunpack.c.l.b16 %v206
    %v703 = vunpack.c.h.b16 %v206
    %v704 = vunpack.c.l.b16 %v207
    %v705 = vunpack.c.h.b16 %v207
    %v706 = vunpack.c.l.b16 %v208
    %v707 = vunpack.c.h.b16 %v208
    %v708 = vunpack.c.l.b16 %v209
    %v709 = vunpack.c.h.b16 %v209
    %v710 = vunpack.c.l.b16 %v210
    %v711 = vunpack.c.h.b16 %v210
    %v712 = vunpack.c.l.b16 %v211
    %v713 = vunpack.c.h.b16 %v211
    %v714 = vunpack.c.l.b16 %v212
    %v715 = vunpack.c.h.b16 %v212
    %v716 = vunpack.c.l.b16 %v213
    %v717 = vunpack.c.h.b16 %v213
    %v718 = vunpack.c.l.b16 %v214
    %v719 = vunpack.c.h.b16 %v214
    %v720 = vunpack.c.l.b16 %v215
    %v721 = vunpack.c.h.b16 %v215
    %v722 = vunpack.c.l.b16 %v216
    %v723 = vunpack.c.h.b16 %v216
    %v724 = vunpack.c.l.b16 %v217
    %v725 = vunpack.c.h.b16 %v217
    %v726 = vunpack.c.l.b16 %v218
    %v727 = vunpack.c.h.b16 %v218
    %v728 = vunpack.c.l.b16 %v219
    %v729 = vunpack.c.h.b16 %v219
    %v730 = vunpack.c.l.b16 %v220
    %v731 = vunpack.c.h.b16 %v220
    %v732 = vunpack.c.l.b16 %v221
    %v733 = vunpack.c.h.b16 %v221
    %v734 = vunpack.c.l.b16 %v222
    %v735 = vunpack.c.h.b16 %v222
    %v736 = vunpack.c.l.b16 %v223
    %v737 = vunpack.c.h.b16 %v223
    %v738 = vunpack.c.l.b16 %v224
    %v739 = vunpack.c.h.b16 %v224
    %v740 = vunpack.c.l.b16 %v225
    %v741 = vunpack.c.h.b16 %v225
    %v742 = vunpack.c.l.b16 %v226
    %v743 = vunpack.c.h.b16 %v226
    %v744 = vunpack.c.l.b16 %v227
    %v745 = vunpack.c.h.b16 %v227
    %v746 = vunpack.c.l.b16 %v228
    %v747 = vunpack.c.h.b16 %v228
    %v748 = vunpack.c.l.b16 %v229
    %v749 = vunpack.c.h.b16 %v229
    %v750 = vunpack.c.l.b16 %v230
    %v751 = vunpack.c.h.b16 %v230
    %v752 = vunpack.c.l.b16 %v231
    %v753 = vunpack.c.h.b16 %v231
    %v754 = vunpack.c.l.b16 %v232
    %v755 = vunpack.c.h.b16 %v232
    %v756 = vunpack.c.l.b16 %v233
    %v757 = vunpack.c.h.b16 %v233
    %v758 = vunpack.c.l.b16 %v234
    %v759 = vunpack.c.h.b16 %v234
    %v760 = vunpack.c.l.b16 %v235
    %v761 = vunpack.c.h.b16 %v235
    %v762 = vunpack.c.l.b16 %v236
    %v763 = vunpack.c.h.b16 %v236
    %v764 = vunpack.c.l.b16 %v237
    %v765 = vunpack.c.h.b16 %v237
    %v766 = vunpack.c.l.b16 %v238
    %v767 = vunpack.c.h.b16 %v238
    %v768 = vunpack.c.l.b16 %v239
    %v769 = vunpack.c.h.b16 %v239
    %v770 = vunpack.c.l.b16 %v240
    %v771 = vunpack.c.h.b16 %v240
    %v772 = vunpack.c.l.b16 %v241
    %v773 = vunpack.c.h.b16 %v241
    %v774 = vunpack.c.l.b16 %v242
    %v775 = vunpack.c.h.b16 %v242
    %v776 = vunpack.c.l.b16 %v243
    %v777 = vunpack.c.h.b16 %v243
    %v778 = vunpack.c.l.b16 %v244
    %v779 = vunpack.c.h.b16 %v244
    %v780 = vunpack.c.l.b16 %v245
    %v781 = vunpack.c.h.b16 %v245
    %v782 = vunpack.c.l.b16 %v246
    %v783 = vunpack.c.h.b16 %v246
    %v784 = vunpack.c.l.b16 %v247
    %v785 = vunpack.c.h.b16 %v247
    %v786 = vunpack.c.l.b16 %v248
    %v787 = vunpack.c.h.b16 %v248
    %v788 = vunpack.c.l.b16 %v249
    %v789 = vunpack.c.h.b16 %v249
    %v790 = vunpack.c.l.b16 %v250
    %v791 = vunpack.c.h.b16 %v250
    %v792 = vunpack.c.l.b16 %v251
    %v793 = vunpack.c.h.b16 %v251
    %v794 = vunpack.c.l.b16 %v252
    %v795 = vunpack.c.h.b16 %v252
    %v796 = vunpack.c.l.b16 %v253
    %v797 = vunpack.c.h.b16 %v253
    %v798 = vunpack.c.l.b16 %v254
    %v799 = vunpack.c.h.b16 %v254
    %v800 = vunpack.c.l.b16 %v255
    %v801 = vunpack.c.h.b16 %v255
    %v802 = vunpack.c.l.b16 %v256
    %v803 = vunpack.c.h.b16 %v256
    %v804 = vunpack.c.l.b16 %v257
    %v805 = vunpack.c.h.b16 %v257
    %v806 = vunpack.c.l.b16 %v258
    %v807 = vunpack.c.h.b16 %v258
    %v808 = vunpack.c.l.b16 %v259
    %v809 = vunpack.c.h.b16 %v259
    %v810 = vunpack.c.l.b16 %v260
    %v811 = vunpack.c.h.b16 %v260
    %v812 = vunpack.c.l.b16 %v261
    %v813 = vunpack.c.h.b16 %v261
    %v814 = vunpack.c.l.b16 %v262
    %v815 = vunpack.c.h.b16 %v262
    %v816 = vunpack.c.l.b16 %v263
    %v817 = vunpack.c.h.b16 %v263
    %v818 = vunpack.c.l.b16 %v264
    %v819 = vunpack.c.h.b16 %v264
    %v820 = vunpack.c.l.b16 %v265
    %v821 = vunpack.c.h.b16 %v265
    %v822 = vunpack.c.l.b16 %v266
    %v823 = vunpack.c.h.b16 %v266
    %v824 = vunpack.c.l.b16 %v267
    %v825 = vunpack.c.h.b16 %v267
    %v826 = vunpack.c.l.b16 %v268
    %v827 = vunpack.c.h.b16 %v268
    %v828 = vunpack.c.l.b16 %v269
    %v829 = vunpack.c.h.b16 %v269
    %v830 = vunpack.c.l.b16 %v270
    %v831 = vunpack.c.h.b16 %v270
    %v832 = vunpack.c.l.b16 %v271
    %v833 = vunpack.c.h.b16 %v271
    %v834 = vunpack.c.l.b16 %v272
    %v835 = vunpack.c.h.b16 %v272
    %v836 = vunpack.c.l.b16 %v273
    %v837 = vunpack.c.h.b16 %v273
    %v838 = vunpack.c.l.b16 %v274
    %v839 = vunpack.c.h.b16 %v274
    %v840 = vunpack.c.l.b16 %v275
    %v841 = vunpack.c.h.b16 %v275
    %v842 = vunpack.c.l.b16 %v276
    %v843 = vunpack.c.h.b16 %v276
    %v844 = vunpack.c.l.b16 %v277
    %v845 = vunpack.c.h.b16 %v277
    %v846 = vunpack.c.l.b16 %v278
    %v847 = vunpack.c.h.b16 %v278
    %v848 = vunpack.c.l.b16 %v279
    %v849 = vunpack.c.h.b16 %v279
    %v850 = vunpack.c.l.b16 %v280
    %v851 = vunpack.c.h.b16 %v280
    %v852 = vunpack.c.l.b16 %v281
    %v853 = vunpack.c.h.b16 %v281
    %v854 = vunpack.c.l.b16 %v282
    %v855 = vunpack.c.h.b16 %v282
    %v856 = vunpack.c.l.b16 %v283
    %v857 = vunpack.c.h.b16 %v283
    %v858 = vunpack.c.l.b16 %v284
    %v859 = vunpack.c.h.b16 %v284
    %v860 = vunpack.c.l.b16 %v285
    %v861 = vunpack.c.h.b16 %v285
    %v862 = vunpack.c.l.b16 %v286
    %v863 = vunpack.c.h.b16 %v286
    %v864 = vunpack.c.l.b16 %v287
    %v865 = vunpack.c.h.b16 %v287
    %v866 = vunpack.c.l.b16 %v288
    %v867 = vunpack.c.h.b16 %v288
    %v868 = vunpack.c.l.b16 %v289
    %v869 = vunpack.c.h.b16 %v289
    %v870 = vunpack.c.l.b16 %v290
    %v871 = vunpack.c.h.b16 %v290
    %v872 = vunpack.c.l.b16 %v291
    %v873 = vunpack.c.h.b16 %v291
    %v874 = vunpack.c.l.b16 %v292
    %v875 = vunpack.c.h.b16 %v292
    %v876 = vunpack.c.l.b16 %v293
    %v877 = vunpack.c.h.b16 %v293
    %v878 = vunpack.c.l.b16 %v294
    %v879 = vunpack.c.h.b16 %v294
    %v880 = vunpack.c.l.b16 %v295
    %v881 = vunpack.c.h.b16 %v295
    %v882 = vunpack.c.l.b16 %v296
    %v883 = vunpack.c.h.b16 %v296
    %v884 = vunpack.c.l.b16 %v297
    %v885 = vunpack.c.h.b16 %v297
    %v886 = vunpack.c.l.b16 %v298
    %v887 = vunpack.c.h.b16 %v298
    %v888 = vunpack.c.l.b16 %v299
    %v889 = vunpack.c.h.b16 %v299
    %v890 = vpack.c.b16 %v512, %v506
    %v891 = vpack.c.b16 %v513, %v507
    %v892 = vpack.c.b16 %v514, %v508
    %v893 = vpack.c.b16 %v515, %v509
    %v894 = vpack.c.b16 %v516, %v510
    %v895 = vpack.c.b16 %v517, %v511
    %v896 = vpack.c.b16 %v524, %v518
    %v897 = vpack.c.b16 %v525, %v519
    %v898 = vpack.c.b16 %v526, %v520
    %v899 = vpack.c.b16 %v527, %v521
    %v900 = vpack.c.b16 %v528, %v522
    %v901 = vpack.c.b16 %v529, %v523
    %v902 = vpack.c.b16 %v536, %v530
    %v903 = vpack.c.b16 %v537, %v531
    %v904 = vpack.c.b16 %v538, %v532
    %v905 = vpack.c.b16 %v539, %v533
    %v906 = vpack.c.b16 %v540, %v534
    %v907 = vpack.c.b16 %v541, %v535
    %v908 = vpack.c.b16 %v548, %v542
    %v909 = vpack.c.b16 %v549, %v543
    %v910 = vpack.c.b16 %v550, %v544
    %v911 = vpack.c.b16 %v551, %v545
    %v912 = vpack.c.b16 %v552, %v546
    %v913 = vpack.c.b16 %v553, %v547
    %v914 = vpack.c.b16 %v560, %v554
    %v915 = vpack.c.b16 %v561, %v555
    %v916 = vpack.c.b16 %v562, %v556
    %v917 = vpack.c.b16 %v563, %v557
    %v918 = vpack.c.b16 %v564, %v558
    %v919 = vpack.c.b16 %v565, %v559
    %v920 = vpack.c.b16 %v572, %v566
    %v921 = vpack.c.b16 %v573, %v567
    %v922 = vpack.c.b16 %v574, %v568
    %v923 = vpack.c.b16 %v575, %v569
    %v924 = vpack.c.b16 %v576, %v570
    %v925 = vpack.c.b16 %v577, %v571
    %v926 = vpack.c.b16 %v584, %v578
    %v927 = vpack.c.b16 %v585, %v579
    %v928 = vpack.c.b16 %v586, %v580
    %v929 = vpack.c.b16 %v587, %v581
    %v930 = vpack.c.b16 %v588, %v582
    %v931 = vpack.c.b16 %v589, %v583
    %v932 = vpack.c.b16 %v596, %v590
    %v933 = vpack.c.b16 %v597, %v591
    %v934 = vpack.c.b16 %v598, %v592
    %v935 = vpack.c.b16 %v599, %v593
    %v936 = vpack.c.b16 %v600, %v594
    %v937 = vpack.c.b16 %v601, %v595
    %v938 = vpack.c.b16 %v608, %v602
    %v939 = vpack.c.b16 %v609, %v603
    %v940 = vpack.c.b16 %v610, %v604
    %v941 = vpack.c.b16 %v611, %v605
    %v942 = vpack.c.b16 %v612, %v606
    %v943 = vpack.c.b16 %v613, %v607
    %v944 = vpack.c.b16 %v620, %v614
    %v945 = vpack.c.b16 %v621, %v615
    %v946 = vpack.c.b16 %v622, %v616
    %v947 = vpack.c.b16 %v623, %v617
    %v948 = vpack.c.b16 %v624, %v618
    %v949 = vpack.c.b16 %v625, %v619
    %v950 = vpack.c.b16 %v632, %v626
    %v951 = vpack.c.b16 %v633, %v627
    %v952 = vpack.c.b16 %v634, %v628
    %v953 = vpack.c.b16 %v635, %v629
    %v954 = vpack.c.b16 %v636, %v630
    %v955 = vpack.c.b16 %v637, %v631
    %v956 = vpack.c.b16 %v644, %v638
    %v957 = vpack.c.b16 %v645, %v639
    %v958 = vpack.c.b16 %v646, %v640
    %v959 = vpack.c.b16 %v647, %v641
    %v960 = vpack.c.b16 %v648, %v642
    %v961 = vpack.c.b16 %v649, %v643
    %v962 = vpack.c.b16 %v656, %v650
    %v963 = vpack.c.b16 %v657, %v651
    %v964 = vpack.c.b16 %v658, %v652
    %v965 = vpack.c.b16 %v659, %v653
    %v966 = vpack.c.b16 %v660, %v654
    %v967 = vpack.c.b16 %v661, %v655
    %v968 = vpack.c.b16 %v668, %v662
    %v969 = vpack.c.b16 %v669, %v663
    %v970 = vpack.c.b16 %v670, %v664
    %v971 = vpack.c.b16 %v671, %v665
    %v972 = vpack.c.b16 %v672, %v666
    %v973 = vpack.c.b16 %v673, %v667
    %v974 = vpack.c.b16 %v680, %v674
    %v975 = vpack.c.b16 %v681, %v675
    %v976 = vpack.c.b16 %v682, %v676
    %v977 = vpack.c.b16 %v683, %v677
    %v978 = vpack.c.b16 %v684, %v678
    %v979 = vpack.c.b16 %v685, %v679
    %v980 = vpack.c.b16 %v692, %v686
    %v981 = vpack.c.b16 %v693, %v687
    %v982 = vpack.c.b16 %v694, %v688
    %v983 = vpack.c.b16 %v695, %v689
    %v984 = vpack.c.b16 %v696, %v690
    %v985 = vpack.c.b16 %v697, %v691
    %v986 = vpack.c.b16 %v704, %v698
    %v987 = vpack.c.b16 %v705, %v699
    %v988 = vpack.c.b16 %v706, %v700
    %v989 = vpack.c.b16 %v707, %v701
    %v990 = vpack.c.b16 %v708, %v702
    %v991 = vpack.c.b16 %v709, %v703
    %v992 = vpack.c.b16 %v716, %v710
    %v993 = vpack.c.b16 %v717, %v711
    %v994 = vpack.c.b16 %v718, %v712
    %v995 = vpack.c.b16 %v719, %v713
    %v996 = vpack.c.b16 %v720, %v714
    %v997 = vpack.c.b16 %v721, %v715
    %v998 = vpack.c.b16 %v728, %v722
    %v999 = vpack.c.b16 %v729, %v723
    %v1000 = vpack.c.b16 %v730, %v724
    %v1001 = vpack.c.b16 %v731, %v725
    %v1002 = vpack.c.b16 %v732, %v726
    %v1003 = vpack.c.b16 %v733, %v727
    %v1004 = vpack.c.b16 %v740, %v734
    %v1005 = vpack.c.b16 %v741, %v735
    %v1006 = vpack.c.b16 %v742, %v736
    %v1007 = vpack.c.b16 %v743, %v737
    %v1008 = vpack.c.b16 %v744, %v738
    %v1009 = vpack.c.b16 %v745, %v739
    %v1010 = vpack.c.b16 %v752, %v746
    %v1011 = vpack.c.b16 %v753, %v747
    %v1012 = vpack.c.b16 %v754, %v748
    %v1013 = vpack.c.b16 %v755, %v749
    %v1014 = vpack.c.b16 %v756, %v750
    %v1015 = vpack.c.b16 %v757, %v751
    %v1016 = vpack.c.b16 %v764, %v758
    %v1017 = vpack.c.b16 %v765, %v759
    %v1018 = vpack.c.b16 %v766, %v760
    %v1019 = vpack.c.b16 %v767, %v761
    %v1020 = vpack.c.b16 %v768, %v762
    %v1021 = vpack.c.b16 %v769, %v763
    %v1022 = vpack.c.b16 %v776, %v770
    %v1023 = vpack.c.b16 %v777, %v771
    %v1024 = vpack.c.b16 %v778, %v772
    %v1025 = vpack.c.b16 %v779, %v773
    %v1026 = vpack.c.b16 %v780, %v774
    %v1027 = vpack.c.b16 %v781, %v775
    %v1028 = vpack.c.b16 %v788, %v782
    %v1029 = vpack.c.b16 %v789, %v783
    %v1030 = vpack.c.b16 %v790, %v784
    %v1031 = vpack.c.b16 %v791, %v785
    %v1032 = vpack.c.b16 %v792, %v786
    %v1033 = vpack.c.b16 %v793, %v787
    %v1034 = vpack.c.b16 %v800, %v794
    %v1035 = vpack.c.b16 %v801, %v795
    %v1036 = vpack.c.b16 %v802, %v796
    %v1037 = vpack.c.b16 %v803, %v797
    %v1038 = vpack.c.b16 %v804, %v798
    %v1039 = vpack.c.b16 %v805, %v799
    %v1040 = vpack.c.b16 %v812, %v806
    %v1041 = vpack.c.b16 %v813, %v807
    %v1042 = vpack.c.b16 %v814, %v808
    %v1043 = vpack.c.b16 %v815, %v809
    %v1044 = vpack.c.b16 %v816, %v810
    %v1045 = vpack.c.b16 %v817, %v811
    %v1046 = vpack.c.b16 %v824, %v818
    %v1047 = vpack.c.b16 %v825, %v819
    %v1048 = vpack.c.b16 %v826, %v820
    %v1049 = vpack.c.b16 %v827, %v821
    %v1050 = vpack.c.b16 %v828, %v822
    %v1051 = vpack.c.b16 %v829, %v823
    %v1052 = vpack.c.b16 %v836, %v830
    %v1053 = vpack.c.b16 %v837, %v831
    %v1054 = vpack.c.b16 %v838, %v832
    %v1055 = vpack.c.b16 %v839, %v833
    %v1056 = vpack.c.b16 %v840, %v834
    %v1057 = vpack.c.b16 %v841, %v835
    %v1058 = vpack.c.b16 %v848, %v842
    %v1059 = vpack.c.b16 %v849, %v843
    %v1060 = vpack.c.b16 %v850, %v844
    %v1061 = vpack.c.b16 %v851, %v845
    %v1062 = vpack.c.b16 %v852, %v846
    %v1063 = vpack.c.b16 %v853, %v847
    %v1064 = vpack.c.b16 %v860, %v854
    %v1065 = vpack.c.b16 %v861, %v855
    %v1066 = vpack.c.b16 %v862, %v856
    %v1067 = vpack.c.b16 %v863, %v857
    %v1068 = vpack.c.b16 %v864, %v858
    %v1069 = vpack.c.b16 %v865, %v859
    %v1070 = vpack.c.b16 %v872, %v866
    %v1071 = vpack.c.b16 %v873, %v867
    %v1072 = vpack.c.b16 %v874, %v868
    %v1073 = vpack.c.b16 %v875, %v869
    %v1074 = vpack.c.b16 %v876, %v870
    %v1075 = vpack.c.b16 %v877, %v871
    %v1076 = vpack.c.b16 %v884, %v878
    %v1077 = vpack.c.b16 %v885, %v879
    %v1078 = vpack.c.b16 %v886, %v880
    %v1079 = vpack.c.b16 %v887, %v881
    %v1080 = vpack.c.b16 %v888, %v882
    %v1081 = vpack.c.b16 %v889, %v883
    %1274 = vmatpush.bf16.msra.mxu0 %v932
    %1275 = vmatpush.bf16.msra.mxu0 %v926
    %1276 = vmatpush.bf16.msra.mxu0 %v920
    %1277 = vmatpush.bf16.msra.mxu0 %v914
    %1278 = vmatpush.bf16.msra.mxu0 %v908
    %1279 = vmatpush.bf16.msra.mxu0 %v902
    %1280 = vmatpush.bf16.msra.mxu0 %v896
    %1281 = vmatpush.bf16.msra.mxu0 %v890
    %1282 = vmatmul.bf16.gmra.mxu0 %v92
    %v1283 = vpop.f32.mrf.mxu0
    %v1284 = vadd.f32 %v302, %v1283
    %v1285 = vpop.f32.mrf.mxu0
    %v1286 = vadd.f32 %v302, %v1285
    %1287 = vmatmul.bf16.gmra.mxu0 %v96
    %v1288 = vpop.f32.mrf.mxu0
    %v1289 = vadd.f32 %v302, %v1288
    %v1290 = vpop.f32.mrf.mxu0
    %v1291 = vadd.f32 %v302, %v1290
    %1292 = vmatmul.bf16.gmra.mxu0 %v100
    %v1293 = vpop.f32.mrf.mxu0
    %v1294 = vadd.f32 %v302, %v1293
    %v1295 = vpop.f32.mrf.mxu0
    %v1296 = vadd.f32 %v302, %v1295
    %1297 = vmatmul.bf16.gmra.mxu0 %v104
    %v1298 = vpop.f32.mrf.mxu0
    %v1299 = vadd.f32 %v302, %v1298
    %v1300 = vpop.f32.mrf.mxu0
    %v1301 = vadd.f32 %v302, %v1300
    %1302 = vdwg.mxu0
    %1303 = vmatpush.bf16.msra.mxu0 %v980
    %1304 = vmatpush.bf16.msra.mxu0 %v974
    %1305 = vmatpush.bf16.msra.mxu0 %v968
    %1306 = vmatpush.bf16.msra.mxu0 %v962
    %1307 = vmatpush.bf16.msra.mxu0 %v956
    %1308 = vmatpush.bf16.msra.mxu0 %v950
    %1309 = vmatpush.bf16.msra.mxu0 %v944
    %1310 = vmatpush.bf16.msra.mxu0 %v938
    %1311 = vmatmul.bf16.gmra.mxu0 %v93
    %v1312 = vpop.f32.mrf.mxu0
    %v1313 = vadd.f32 %v1284, %v1312
    %v1314 = vpop.f32.mrf.mxu0
    %v1315 = vadd.f32 %v1286, %v1314
    %1316 = vmatmul.bf16.gmra.mxu0 %v97
    %v1317 = vpop.f32.mrf.mxu0
    %v1318 = vadd.f32 %v1289, %v1317
    %v1319 = vpop.f32.mrf.mxu0
    %v1320 = vadd.f32 %v1291, %v1319
    %1321 = vmatmul.bf16.gmra.mxu0 %v101
    %v1322 = vpop.f32.mrf.mxu0
    %v1323 = vadd.f32 %v1294, %v1322
    %v1324 = vpop.f32.mrf.mxu0
    %v1325 = vadd.f32 %v1296, %v1324
    %1326 = vmatmul.bf16.gmra.mxu0 %v105
    %v1327 = vpop.f32.mrf.mxu0
    %v1328 = vadd.f32 %v1299, %v1327
    %v1329 = vpop.f32.mrf.mxu0
    %v1330 = vadd.f32 %v1301, %v1329
    %1331 = vdwg.mxu0
    %1332 = vmatpush.bf16.msra.mxu0 %v1028
    %1333 = vmatpush.bf16.msra.mxu0 %v1022
    %1334 = vmatpush.bf16.msra.mxu0 %v1016
    %1335 = vmatpush.bf16.msra.mxu0 %v1010
    %1336 = vmatpush.bf16.msra.mxu0 %v1004
    %1337 = vmatpush.bf16.msra.mxu0 %v998
    %1338 = vmatpush.bf16.msra.mxu0 %v992
    %1339 = vmatpush.bf16.msra.mxu0 %v986
    %1340 = vmatmul.bf16.gmra.mxu0 %v94
    %v1341 = vpop.f32.mrf.mxu0
    %v1342 = vadd.f32 %v1313, %v1341
    %v1343 = vpop.f32.mrf.mxu0
    %v1344 = vadd.f32 %v1315, %v1343
    %1345 = vmatmul.bf16.gmra.mxu0 %v98
    %v1346 = vpop.f32.mrf.mxu0
    %v1347 = vadd.f32 %v1318, %v1346
    %v1348 = vpop.f32.mrf.mxu0
    %v1349 = vadd.f32 %v1320, %v1348
    %1350 = vmatmul.bf16.gmra.mxu0 %v102
    %v1351 = vpop.f32.mrf.mxu0
    %v1352 = vadd.f32 %v1323, %v1351
    %v1353 = vpop.f32.mrf.mxu0
    %v1354 = vadd.f32 %v1325, %v1353
    %1355 = vmatmul.bf16.gmra.mxu0 %v106
    %v1356 = vpop.f32.mrf.mxu0
    %v1357 = vadd.f32 %v1328, %v1356
    %v1358 = vpop.f32.mrf.mxu0
    %v1359 = vadd.f32 %v1330, %v1358
    %1360 = vdwg.mxu0
    %1361 = vmatpush.bf16.msra.mxu0 %v1076
    %1362 = vmatpush.bf16.msra.mxu0 %v1070
    %1363 = vmatpush.bf16.msra.mxu0 %v1064
    %1364 = vmatpush.bf16.msra.mxu0 %v1058
    %1365 = vmatpush.bf16.msra.mxu0 %v1052
    %1366 = vmatpush.bf16.msra.mxu0 %v1046
    %1367 = vmatpush.bf16.msra.mxu0 %v1040
    %1368 = vmatpush.bf16.msra.mxu0 %v1034
    %1369 = vmatmul.bf16.gmra.mxu0 %v95
    %v1370 = vpop.f32.mrf.mxu0
    %v1371 = vadd.f32 %v1342, %v1370
    %v1372 = vpop.f32.mrf.mxu0
    %v1373 = vadd.f32 %v1344, %v1372
    %1374 = vmatmul.bf16.gmra.mxu0 %v99
    %v1375 = vpop.f32.mrf.mxu0
    %v1376 = vadd.f32 %v1347, %v1375
    %v1377 = vpop.f32.mrf.mxu0
    %v1378 = vadd.f32 %v1349, %v1377
    %1379 = vmatmul.bf16.gmra.mxu0 %v103
    %v1380 = vpop.f32.mrf.mxu0
    %v1381 = vadd.f32 %v1352, %v1380
    %v1382 = vpop.f32.mrf.mxu0
    %v1383 = vadd.f32 %v1354, %v1382
    %1384 = vmatmul.bf16.gmra.mxu0 %v107
    %v1385 = vpop.f32.mrf.mxu0
    %v1386 = vadd.f32 %v1357, %v1385
    %v1387 = vpop.f32.mrf.mxu0
    %v1388 = vadd.f32 %v1359, %v1387
    %1389 = vdwg.mxu0
    %1390 = vmatpush.bf16.msra.mxu0 %v933
    %1391 = vmatpush.bf16.msra.mxu0 %v927
    %1392 = vmatpush.bf16.msra.mxu0 %v921
    %1393 = vmatpush.bf16.msra.mxu0 %v915
    %1394 = vmatpush.bf16.msra.mxu0 %v909
    %1395 = vmatpush.bf16.msra.mxu0 %v903
    %1396 = vmatpush.bf16.msra.mxu0 %v897
    %1397 = vmatpush.bf16.msra.mxu0 %v891
    %1398 = vmatmul.bf16.gmra.mxu0 %v92
    %v1399 = vpop.f32.mrf.mxu0
    %v1400 = vadd.f32 %v303, %v1399
    %v1401 = vpop.f32.mrf.mxu0
    %v1402 = vadd.f32 %v303, %v1401
    %1403 = vmatmul.bf16.gmra.mxu0 %v96
    %v1404 = vpop.f32.mrf.mxu0
    %v1405 = vadd.f32 %v303, %v1404
    %v1406 = vpop.f32.mrf.mxu0
    %v1407 = vadd.f32 %v303, %v1406
    %1408 = vmatmul.bf16.gmra.mxu0 %v100
    %v1409 = vpop.f32.mrf.mxu0
    %v1410 = vadd.f32 %v303, %v1409
    %v1411 = vpop.f32.mrf.mxu0
    %v1412 = vadd.f32 %v303, %v1411
    %1413 = vmatmul.bf16.gmra.mxu0 %v104
    %v1414 = vpop.f32.mrf.mxu0
    %v1415 = vadd.f32 %v303, %v1414
    %v1416 = vpop.f32.mrf.mxu0
    %v1417 = vadd.f32 %v303, %v1416
    %1418 = vdwg.mxu0
    %1419 = vmatpush.bf16.msra.mxu0 %v981
    %1420 = vmatpush.bf16.msra.mxu0 %v975
    %1421 = vmatpush.bf16.msra.mxu0 %v969
    %1422 = vmatpush.bf16.msra.mxu0 %v963
    %1423 = vmatpush.bf16.msra.mxu0 %v957
    %1424 = vmatpush.bf16.msra.mxu0 %v951
    %1425 = vmatpush.bf16.msra.mxu0 %v945
    %1426 = vmatpush.bf16.msra.mxu0 %v939
    %1427 = vmatmul.bf16.gmra.mxu0 %v93
    %v1428 = vpop.f32.mrf.mxu0
    %v1429 = vadd.f32 %v1400, %v1428
    %v1430 = vpop.f32.mrf.mxu0
    %v1431 = vadd.f32 %v1402, %v1430
    %1432 = vmatmul.bf16.gmra.mxu0 %v97
    %v1433 = vpop.f32.mrf.mxu0
    %v1434 = vadd.f32 %v1405, %v1433
    %v1435 = vpop.f32.mrf.mxu0
    %v1436 = vadd.f32 %v1407, %v1435
    %1437 = vmatmul.bf16.gmra.mxu0 %v101
    %v1438 = vpop.f32.mrf.mxu0
    %v1439 = vadd.f32 %v1410, %v1438
    %v1440 = vpop.f32.mrf.mxu0
    %v1441 = vadd.f32 %v1412, %v1440
    %1442 = vmatmul.bf16.gmra.mxu0 %v105
    %v1443 = vpop.f32.mrf.mxu0
    %v1444 = vadd.f32 %v1415, %v1443
    %v1445 = vpop.f32.mrf.mxu0
    %v1446 = vadd.f32 %v1417, %v1445
    %1447 = vdwg.mxu0
    %1448 = vmatpush.bf16.msra.mxu0 %v1029
    %1449 = vmatpush.bf16.msra.mxu0 %v1023
    %1450 = vmatpush.bf16.msra.mxu0 %v1017
    %1451 = vmatpush.bf16.msra.mxu0 %v1011
    %1452 = vmatpush.bf16.msra.mxu0 %v1005
    %1453 = vmatpush.bf16.msra.mxu0 %v999
    %1454 = vmatpush.bf16.msra.mxu0 %v993
    %1455 = vmatpush.bf16.msra.mxu0 %v987
    %1456 = vmatmul.bf16.gmra.mxu0 %v94
    %v1457 = vpop.f32.mrf.mxu0
    %v1458 = vadd.f32 %v1429, %v1457
    %v1459 = vpop.f32.mrf.mxu0
    %v1460 = vadd.f32 %v1431, %v1459
    %1461 = vmatmul.bf16.gmra.mxu0 %v98
    %v1462 = vpop.f32.mrf.mxu0
    %v1463 = vadd.f32 %v1434, %v1462
    %v1464 = vpop.f32.mrf.mxu0
    %v1465 = vadd.f32 %v1436, %v1464
    %1466 = vmatmul.bf16.gmra.mxu0 %v102
    %v1467 = vpop.f32.mrf.mxu0
    %v1468 = vadd.f32 %v1439, %v1467
    %v1469 = vpop.f32.mrf.mxu0
    %v1470 = vadd.f32 %v1441, %v1469
    %1471 = vmatmul.bf16.gmra.mxu0 %v106
    %v1472 = vpop.f32.mrf.mxu0
    %v1473 = vadd.f32 %v1444, %v1472
    %v1474 = vpop.f32.mrf.mxu0
    %v1475 = vadd.f32 %v1446, %v1474
    %1476 = vdwg.mxu0
    %1477 = vmatpush.bf16.msra.mxu0 %v1077
    %1478 = vmatpush.bf16.msra.mxu0 %v1071
    %1479 = vmatpush.bf16.msra.mxu0 %v1065
    %1480 = vmatpush.bf16.msra.mxu0 %v1059
    %1481 = vmatpush.bf16.msra.mxu0 %v1053
    %1482 = vmatpush.bf16.msra.mxu0 %v1047
    %1483 = vmatpush.bf16.msra.mxu0 %v1041
    %1484 = vmatpush.bf16.msra.mxu0 %v1035
    %1485 = vmatmul.bf16.gmra.mxu0 %v95
    %v1486 = vpop.f32.mrf.mxu0
    %v1487 = vadd.f32 %v1458, %v1486
    %v1488 = vpop.f32.mrf.mxu0
    %v1489 = vadd.f32 %v1460, %v1488
    %1490 = vmatmul.bf16.gmra.mxu0 %v99
    %v1491 = vpop.f32.mrf.mxu0
    %v1492 = vadd.f32 %v1463, %v1491
    %v1493 = vpop.f32.mrf.mxu0
    %v1494 = vadd.f32 %v1465, %v1493
    %1495 = vmatmul.bf16.gmra.mxu0 %v103
    %v1496 = vpop.f32.mrf.mxu0
    %v1497 = vadd.f32 %v1468, %v1496
    %v1498 = vpop.f32.mrf.mxu0
    %v1499 = vadd.f32 %v1470, %v1498
    %1500 = vmatmul.bf16.gmra.mxu0 %v107
    %v1501 = vpop.f32.mrf.mxu0
    %v1502 = vadd.f32 %v1473, %v1501
    %v1503 = vpop.f32.mrf.mxu0
    %v1504 = vadd.f32 %v1475, %v1503
    %1505 = vdwg.mxu0
    %1506 = vmatpush.bf16.msra.mxu0 %v934
    %1507 = vmatpush.bf16.msra.mxu0 %v928
    %1508 = vmatpush.bf16.msra.mxu0 %v922
    %1509 = vmatpush.bf16.msra.mxu0 %v916
    %1510 = vmatpush.bf16.msra.mxu0 %v910
    %1511 = vmatpush.bf16.msra.mxu0 %v904
    %1512 = vmatpush.bf16.msra.mxu0 %v898
    %1513 = vmatpush.bf16.msra.mxu0 %v892
    %1514 = vmatmul.bf16.gmra.mxu0 %v92
    %v1515 = vpop.f32.mrf.mxu0
    %v1516 = vadd.f32 %v304, %v1515
    %v1517 = vpop.f32.mrf.mxu0
    %v1518 = vadd.f32 %v304, %v1517
    %1519 = vmatmul.bf16.gmra.mxu0 %v96
    %v1520 = vpop.f32.mrf.mxu0
    %v1521 = vadd.f32 %v304, %v1520
    %v1522 = vpop.f32.mrf.mxu0
    %v1523 = vadd.f32 %v304, %v1522
    %1524 = vmatmul.bf16.gmra.mxu0 %v100
    %v1525 = vpop.f32.mrf.mxu0
    %v1526 = vadd.f32 %v304, %v1525
    %v1527 = vpop.f32.mrf.mxu0
    %v1528 = vadd.f32 %v304, %v1527
    %1529 = vmatmul.bf16.gmra.mxu0 %v104
    %v1530 = vpop.f32.mrf.mxu0
    %v1531 = vadd.f32 %v304, %v1530
    %v1532 = vpop.f32.mrf.mxu0
    %v1533 = vadd.f32 %v304, %v1532
    %1534 = vdwg.mxu0
    %1535 = vmatpush.bf16.msra.mxu0 %v982
    %1536 = vmatpush.bf16.msra.mxu0 %v976
    %1537 = vmatpush.bf16.msra.mxu0 %v970
    %1538 = vmatpush.bf16.msra.mxu0 %v964
    %1539 = vmatpush.bf16.msra.mxu0 %v958
    %1540 = vmatpush.bf16.msra.mxu0 %v952
    %1541 = vmatpush.bf16.msra.mxu0 %v946
    %1542 = vmatpush.bf16.msra.mxu0 %v940
    %1543 = vmatmul.bf16.gmra.mxu0 %v93
    %v1544 = vpop.f32.mrf.mxu0
    %v1545 = vadd.f32 %v1516, %v1544
    %v1546 = vpop.f32.mrf.mxu0
    %v1547 = vadd.f32 %v1518, %v1546
    %1548 = vmatmul.bf16.gmra.mxu0 %v97
    %v1549 = vpop.f32.mrf.mxu0
    %v1550 = vadd.f32 %v1521, %v1549
    %v1551 = vpop.f32.mrf.mxu0
    %v1552 = vadd.f32 %v1523, %v1551
    %1553 = vmatmul.bf16.gmra.mxu0 %v101
    %v1554 = vpop.f32.mrf.mxu0
    %v1555 = vadd.f32 %v1526, %v1554
    %v1556 = vpop.f32.mrf.mxu0
    %v1557 = vadd.f32 %v1528, %v1556
    %1558 = vmatmul.bf16.gmra.mxu0 %v105
    %v1559 = vpop.f32.mrf.mxu0
    %v1560 = vadd.f32 %v1531, %v1559
    %v1561 = vpop.f32.mrf.mxu0
    %v1562 = vadd.f32 %v1533, %v1561
    %1563 = vdwg.mxu0
    %1564 = vmatpush.bf16.msra.mxu0 %v1030
    %1565 = vmatpush.bf16.msra.mxu0 %v1024
    %1566 = vmatpush.bf16.msra.mxu0 %v1018
    %1567 = vmatpush.bf16.msra.mxu0 %v1012
    %1568 = vmatpush.bf16.msra.mxu0 %v1006
    %1569 = vmatpush.bf16.msra.mxu0 %v1000
    %1570 = vmatpush.bf16.msra.mxu0 %v994
    %1571 = vmatpush.bf16.msra.mxu0 %v988
    %1572 = vmatmul.bf16.gmra.mxu0 %v94
    %v1573 = vpop.f32.mrf.mxu0
    %v1574 = vadd.f32 %v1545, %v1573
    %v1575 = vpop.f32.mrf.mxu0
    %v1576 = vadd.f32 %v1547, %v1575
    %1577 = vmatmul.bf16.gmra.mxu0 %v98
    %v1578 = vpop.f32.mrf.mxu0
    %v1579 = vadd.f32 %v1550, %v1578
    %v1580 = vpop.f32.mrf.mxu0
    %v1581 = vadd.f32 %v1552, %v1580
    %1582 = vmatmul.bf16.gmra.mxu0 %v102
    %v1583 = vpop.f32.mrf.mxu0
    %v1584 = vadd.f32 %v1555, %v1583
    %v1585 = vpop.f32.mrf.mxu0
    %v1586 = vadd.f32 %v1557, %v1585
    %1587 = vmatmul.bf16.gmra.mxu0 %v106
    %v1588 = vpop.f32.mrf.mxu0
    %v1589 = vadd.f32 %v1560, %v1588
    %v1590 = vpop.f32.mrf.mxu0
    %v1591 = vadd.f32 %v1562, %v1590
    %1592 = vdwg.mxu0
    %1593 = vmatpush.bf16.msra.mxu0 %v1078
    %1594 = vmatpush.bf16.msra.mxu0 %v1072
    %1595 = vmatpush.bf16.msra.mxu0 %v1066
    %1596 = vmatpush.bf16.msra.mxu0 %v1060
    %1597 = vmatpush.bf16.msra.mxu0 %v1054
    %1598 = vmatpush.bf16.msra.mxu0 %v1048
    %1599 = vmatpush.bf16.msra.mxu0 %v1042
    %1600 = vmatpush.bf16.msra.mxu0 %v1036
    %1601 = vmatmul.bf16.gmra.mxu0 %v95
    %v1602 = vpop.f32.mrf.mxu0
    %v1603 = vadd.f32 %v1574, %v1602
    %v1604 = vpop.f32.mrf.mxu0
    %v1605 = vadd.f32 %v1576, %v1604
    %1606 = vmatmul.bf16.gmra.mxu0 %v99
    %v1607 = vpop.f32.mrf.mxu0
    %v1608 = vadd.f32 %v1579, %v1607
    %v1609 = vpop.f32.mrf.mxu0
    %v1610 = vadd.f32 %v1581, %v1609
    %1611 = vmatmul.bf16.gmra.mxu0 %v103
    %v1612 = vpop.f32.mrf.mxu0
    %v1613 = vadd.f32 %v1584, %v1612
    %v1614 = vpop.f32.mrf.mxu0
    %v1615 = vadd.f32 %v1586, %v1614
    %1616 = vmatmul.bf16.gmra.mxu0 %v107
    %v1617 = vpop.f32.mrf.mxu0
    %v1618 = vadd.f32 %v1589, %v1617
    %v1619 = vpop.f32.mrf.mxu0
    %v1620 = vadd.f32 %v1591, %v1619
    %1621 = vdwg.mxu0
    %1622 = vmatpush.bf16.msra.mxu0 %v935
    %1623 = vmatpush.bf16.msra.mxu0 %v929
    %1624 = vmatpush.bf16.msra.mxu0 %v923
    %1625 = vmatpush.bf16.msra.mxu0 %v917
    %1626 = vmatpush.bf16.msra.mxu0 %v911
    %1627 = vmatpush.bf16.msra.mxu0 %v905
    %1628 = vmatpush.bf16.msra.mxu0 %v899
    %1629 = vmatpush.bf16.msra.mxu0 %v893
    %1630 = vmatmul.bf16.gmra.mxu0 %v92
    %v1631 = vpop.f32.mrf.mxu0
    %v1632 = vadd.f32 %v305, %v1631
    %v1633 = vpop.f32.mrf.mxu0
    %v1634 = vadd.f32 %v305, %v1633
    %1635 = vmatmul.bf16.gmra.mxu0 %v96
    %v1636 = vpop.f32.mrf.mxu0
    %v1637 = vadd.f32 %v305, %v1636
    %v1638 = vpop.f32.mrf.mxu0
    %v1639 = vadd.f32 %v305, %v1638
    %1640 = vmatmul.bf16.gmra.mxu0 %v100
    %v1641 = vpop.f32.mrf.mxu0
    %v1642 = vadd.f32 %v305, %v1641
    %v1643 = vpop.f32.mrf.mxu0
    %v1644 = vadd.f32 %v305, %v1643
    %1645 = vmatmul.bf16.gmra.mxu0 %v104
    %v1646 = vpop.f32.mrf.mxu0
    %v1647 = vadd.f32 %v305, %v1646
    %v1648 = vpop.f32.mrf.mxu0
    %v1649 = vadd.f32 %v305, %v1648
    %1650 = vdwg.mxu0
    %1651 = vmatpush.bf16.msra.mxu0 %v983
    %1652 = vmatpush.bf16.msra.mxu0 %v977
    %1653 = vmatpush.bf16.msra.mxu0 %v971
    %1654 = vmatpush.bf16.msra.mxu0 %v965
    %1655 = vmatpush.bf16.msra.mxu0 %v959
    %1656 = vmatpush.bf16.msra.mxu0 %v953
    %1657 = vmatpush.bf16.msra.mxu0 %v947
    %1658 = vmatpush.bf16.msra.mxu0 %v941
    %1659 = vmatmul.bf16.gmra.mxu0 %v93
    %v1660 = vpop.f32.mrf.mxu0
    %v1661 = vadd.f32 %v1632, %v1660
    %v1662 = vpop.f32.mrf.mxu0
    %v1663 = vadd.f32 %v1634, %v1662
    %1664 = vmatmul.bf16.gmra.mxu0 %v97
    %v1665 = vpop.f32.mrf.mxu0
    %v1666 = vadd.f32 %v1637, %v1665
    %v1667 = vpop.f32.mrf.mxu0
    %v1668 = vadd.f32 %v1639, %v1667
    %1669 = vmatmul.bf16.gmra.mxu0 %v101
    %v1670 = vpop.f32.mrf.mxu0
    %v1671 = vadd.f32 %v1642, %v1670
    %v1672 = vpop.f32.mrf.mxu0
    %v1673 = vadd.f32 %v1644, %v1672
    %1674 = vmatmul.bf16.gmra.mxu0 %v105
    %v1675 = vpop.f32.mrf.mxu0
    %v1676 = vadd.f32 %v1647, %v1675
    %v1677 = vpop.f32.mrf.mxu0
    %v1678 = vadd.f32 %v1649, %v1677
    %1679 = vdwg.mxu0
    %1680 = vmatpush.bf16.msra.mxu0 %v1031
    %1681 = vmatpush.bf16.msra.mxu0 %v1025
    %1682 = vmatpush.bf16.msra.mxu0 %v1019
    %1683 = vmatpush.bf16.msra.mxu0 %v1013
    %1684 = vmatpush.bf16.msra.mxu0 %v1007
    %1685 = vmatpush.bf16.msra.mxu0 %v1001
    %1686 = vmatpush.bf16.msra.mxu0 %v995
    %1687 = vmatpush.bf16.msra.mxu0 %v989
    %1688 = vmatmul.bf16.gmra.mxu0 %v94
    %v1689 = vpop.f32.mrf.mxu0
    %v1690 = vadd.f32 %v1661, %v1689
    %v1691 = vpop.f32.mrf.mxu0
    %v1692 = vadd.f32 %v1663, %v1691
    %1693 = vmatmul.bf16.gmra.mxu0 %v98
    %v1694 = vpop.f32.mrf.mxu0
    %v1695 = vadd.f32 %v1666, %v1694
    %v1696 = vpop.f32.mrf.mxu0
    %v1697 = vadd.f32 %v1668, %v1696
    %1698 = vmatmul.bf16.gmra.mxu0 %v102
    %v1699 = vpop.f32.mrf.mxu0
    %v1700 = vadd.f32 %v1671, %v1699
    %v1701 = vpop.f32.mrf.mxu0
    %v1702 = vadd.f32 %v1673, %v1701
    %1703 = vmatmul.bf16.gmra.mxu0 %v106
    %v1704 = vpop.f32.mrf.mxu0
    %v1705 = vadd.f32 %v1676, %v1704
    %v1706 = vpop.f32.mrf.mxu0
    %v1707 = vadd.f32 %v1678, %v1706
    %1708 = vdwg.mxu0
    %1709 = vmatpush.bf16.msra.mxu0 %v1079
    %1710 = vmatpush.bf16.msra.mxu0 %v1073
    %1711 = vmatpush.bf16.msra.mxu0 %v1067
    %1712 = vmatpush.bf16.msra.mxu0 %v1061
    %1713 = vmatpush.bf16.msra.mxu0 %v1055
    %1714 = vmatpush.bf16.msra.mxu0 %v1049
    %1715 = vmatpush.bf16.msra.mxu0 %v1043
    %1716 = vmatpush.bf16.msra.mxu0 %v1037
    %1717 = vmatmul.bf16.gmra.mxu0 %v95
    %v1718 = vpop.f32.mrf.mxu0
    %v1719 = vadd.f32 %v1690, %v1718
    %v1720 = vpop.f32.mrf.mxu0
    %v1721 = vadd.f32 %v1692, %v1720
    %1722 = vmatmul.bf16.gmra.mxu0 %v99
    %v1723 = vpop.f32.mrf.mxu0
    %v1724 = vadd.f32 %v1695, %v1723
    %v1725 = vpop.f32.mrf.mxu0
    %v1726 = vadd.f32 %v1697, %v1725
    %1727 = vmatmul.bf16.gmra.mxu0 %v103
    %v1728 = vpop.f32.mrf.mxu0
    %v1729 = vadd.f32 %v1700, %v1728
    %v1730 = vpop.f32.mrf.mxu0
    %v1731 = vadd.f32 %v1702, %v1730
    %1732 = vmatmul.bf16.gmra.mxu0 %v107
    %v1733 = vpop.f32.mrf.mxu0
    %v1734 = vadd.f32 %v1705, %v1733
    %v1735 = vpop.f32.mrf.mxu0
    %v1736 = vadd.f32 %v1707, %v1735
    %1737 = vdwg.mxu0
    %1738 = vmatpush.bf16.msra.mxu0 %v936
    %1739 = vmatpush.bf16.msra.mxu0 %v930
    %1740 = vmatpush.bf16.msra.mxu0 %v924
    %1741 = vmatpush.bf16.msra.mxu0 %v918
    %1742 = vmatpush.bf16.msra.mxu0 %v912
    %1743 = vmatpush.bf16.msra.mxu0 %v906
    %1744 = vmatpush.bf16.msra.mxu0 %v900
    %1745 = vmatpush.bf16.msra.mxu0 %v894
    %1746 = vmatmul.bf16.gmra.mxu0 %v92
    %v1747 = vpop.f32.mrf.mxu0
    %v1748 = vadd.f32 %v306, %v1747
    %v1749 = vpop.f32.mrf.mxu0
    %v1750 = vadd.f32 %v306, %v1749
    %1751 = vmatmul.bf16.gmra.mxu0 %v96
    %v1752 = vpop.f32.mrf.mxu0
    %v1753 = vadd.f32 %v306, %v1752
    %v1754 = vpop.f32.mrf.mxu0
    %v1755 = vadd.f32 %v306, %v1754
    %1756 = vmatmul.bf16.gmra.mxu0 %v100
    %v1757 = vpop.f32.mrf.mxu0
    %v1758 = vadd.f32 %v306, %v1757
    %v1759 = vpop.f32.mrf.mxu0
    %v1760 = vadd.f32 %v306, %v1759
    %1761 = vmatmul.bf16.gmra.mxu0 %v104
    %v1762 = vpop.f32.mrf.mxu0
    %v1763 = vadd.f32 %v306, %v1762
    %v1764 = vpop.f32.mrf.mxu0
    %v1765 = vadd.f32 %v306, %v1764
    %1766 = vdwg.mxu0
    %1767 = vmatpush.bf16.msra.mxu0 %v984
    %1768 = vmatpush.bf16.msra.mxu0 %v978
    %1769 = vmatpush.bf16.msra.mxu0 %v972
    %1770 = vmatpush.bf16.msra.mxu0 %v966
    %1771 = vmatpush.bf16.msra.mxu0 %v960
    %1772 = vmatpush.bf16.msra.mxu0 %v954
    %1773 = vmatpush.bf16.msra.mxu0 %v948
    %1774 = vmatpush.bf16.msra.mxu0 %v942
    %1775 = vmatmul.bf16.gmra.mxu0 %v93
    %v1776 = vpop.f32.mrf.mxu0
    %v1777 = vadd.f32 %v1748, %v1776
    %v1778 = vpop.f32.mrf.mxu0
    %v1779 = vadd.f32 %v1750, %v1778
    %1780 = vmatmul.bf16.gmra.mxu0 %v97
    %v1781 = vpop.f32.mrf.mxu0
    %v1782 = vadd.f32 %v1753, %v1781
    %v1783 = vpop.f32.mrf.mxu0
    %v1784 = vadd.f32 %v1755, %v1783
    %1785 = vmatmul.bf16.gmra.mxu0 %v101
    %v1786 = vpop.f32.mrf.mxu0
    %v1787 = vadd.f32 %v1758, %v1786
    %v1788 = vpop.f32.mrf.mxu0
    %v1789 = vadd.f32 %v1760, %v1788
    %1790 = vmatmul.bf16.gmra.mxu0 %v105
    %v1791 = vpop.f32.mrf.mxu0
    %v1792 = vadd.f32 %v1763, %v1791
    %v1793 = vpop.f32.mrf.mxu0
    %v1794 = vadd.f32 %v1765, %v1793
    %1795 = vdwg.mxu0
    %1796 = vmatpush.bf16.msra.mxu0 %v1032
    %1797 = vmatpush.bf16.msra.mxu0 %v1026
    %1798 = vmatpush.bf16.msra.mxu0 %v1020
    %1799 = vmatpush.bf16.msra.mxu0 %v1014
    %1800 = vmatpush.bf16.msra.mxu0 %v1008
    %1801 = vmatpush.bf16.msra.mxu0 %v1002
    %1802 = vmatpush.bf16.msra.mxu0 %v996
    %1803 = vmatpush.bf16.msra.mxu0 %v990
    %1804 = vmatmul.bf16.gmra.mxu0 %v94
    %v1805 = vpop.f32.mrf.mxu0
    %v1806 = vadd.f32 %v1777, %v1805
    %v1807 = vpop.f32.mrf.mxu0
    %v1808 = vadd.f32 %v1779, %v1807
    %1809 = vmatmul.bf16.gmra.mxu0 %v98
    %v1810 = vpop.f32.mrf.mxu0
    %v1811 = vadd.f32 %v1782, %v1810
    %v1812 = vpop.f32.mrf.mxu0
    %v1813 = vadd.f32 %v1784, %v1812
    %1814 = vmatmul.bf16.gmra.mxu0 %v102
    %v1815 = vpop.f32.mrf.mxu0
    %v1816 = vadd.f32 %v1787, %v1815
    %v1817 = vpop.f32.mrf.mxu0
    %v1818 = vadd.f32 %v1789, %v1817
    %1819 = vmatmul.bf16.gmra.mxu0 %v106
    %v1820 = vpop.f32.mrf.mxu0
    %v1821 = vadd.f32 %v1792, %v1820
    %v1822 = vpop.f32.mrf.mxu0
    %v1823 = vadd.f32 %v1794, %v1822
    %1824 = vdwg.mxu0
    %1825 = vmatpush.bf16.msra.mxu0 %v1080
    %1826 = vmatpush.bf16.msra.mxu0 %v1074
    %1827 = vmatpush.bf16.msra.mxu0 %v1068
    %1828 = vmatpush.bf16.msra.mxu0 %v1062
    %1829 = vmatpush.bf16.msra.mxu0 %v1056
    %1830 = vmatpush.bf16.msra.mxu0 %v1050
    %1831 = vmatpush.bf16.msra.mxu0 %v1044
    %1832 = vmatpush.bf16.msra.mxu0 %v1038
    %1833 = vmatmul.bf16.gmra.mxu0 %v95
    %v1834 = vpop.f32.mrf.mxu0
    %v1835 = vadd.f32 %v1806, %v1834
    %v1836 = vpop.f32.mrf.mxu0
    %v1837 = vadd.f32 %v1808, %v1836
    %1838 = vmatmul.bf16.gmra.mxu0 %v99
    %v1839 = vpop.f32.mrf.mxu0
    %v1840 = vadd.f32 %v1811, %v1839
    %v1841 = vpop.f32.mrf.mxu0
    %v1842 = vadd.f32 %v1813, %v1841
    %1843 = vmatmul.bf16.gmra.mxu0 %v103
    %v1844 = vpop.f32.mrf.mxu0
    %v1845 = vadd.f32 %v1816, %v1844
    %v1846 = vpop.f32.mrf.mxu0
    %v1847 = vadd.f32 %v1818, %v1846
    %1848 = vmatmul.bf16.gmra.mxu0 %v107
    %v1849 = vpop.f32.mrf.mxu0
    %v1850 = vadd.f32 %v1821, %v1849
    %v1851 = vpop.f32.mrf.mxu0
    %v1852 = vadd.f32 %v1823, %v1851
    %1853 = vdwg.mxu0
    %1854 = vmatpush.bf16.msra.mxu0 %v937
    %1855 = vmatpush.bf16.msra.mxu0 %v931
    %1856 = vmatpush.bf16.msra.mxu0 %v925
    %1857 = vmatpush.bf16.msra.mxu0 %v919
    %1858 = vmatpush.bf16.msra.mxu0 %v913
    %1859 = vmatpush.bf16.msra.mxu0 %v907
    %1860 = vmatpush.bf16.msra.mxu0 %v901
    %1861 = vmatpush.bf16.msra.mxu0 %v895
    %1862 = vmatmul.bf16.gmra.mxu0 %v92
    %v1863 = vpop.f32.mrf.mxu0
    %v1864 = vadd.f32 %v307, %v1863
    %v1865 = vpop.f32.mrf.mxu0
    %v1866 = vadd.f32 %v307, %v1865
    %1867 = vmatmul.bf16.gmra.mxu0 %v96
    %v1868 = vpop.f32.mrf.mxu0
    %v1869 = vadd.f32 %v307, %v1868
    %v1870 = vpop.f32.mrf.mxu0
    %v1871 = vadd.f32 %v307, %v1870
    %1872 = vmatmul.bf16.gmra.mxu0 %v100
    %v1873 = vpop.f32.mrf.mxu0
    %v1874 = vadd.f32 %v307, %v1873
    %v1875 = vpop.f32.mrf.mxu0
    %v1876 = vadd.f32 %v307, %v1875
    %1877 = vmatmul.bf16.gmra.mxu0 %v104
    %v1878 = vpop.f32.mrf.mxu0
    %v1879 = vadd.f32 %v307, %v1878
    %v1880 = vpop.f32.mrf.mxu0
    %v1881 = vadd.f32 %v307, %v1880
    %1882 = vdwg.mxu0
    %1883 = vmatpush.bf16.msra.mxu0 %v985
    %1884 = vmatpush.bf16.msra.mxu0 %v979
    %1885 = vmatpush.bf16.msra.mxu0 %v973
    %1886 = vmatpush.bf16.msra.mxu0 %v967
    %1887 = vmatpush.bf16.msra.mxu0 %v961
    %1888 = vmatpush.bf16.msra.mxu0 %v955
    %1889 = vmatpush.bf16.msra.mxu0 %v949
    %1890 = vmatpush.bf16.msra.mxu0 %v943
    %1891 = vmatmul.bf16.gmra.mxu0 %v93
    %v1892 = vpop.f32.mrf.mxu0
    %v1893 = vadd.f32 %v1864, %v1892
    %v1894 = vpop.f32.mrf.mxu0
    %v1895 = vadd.f32 %v1866, %v1894
    %1896 = vmatmul.bf16.gmra.mxu0 %v97
    %v1897 = vpop.f32.mrf.mxu0
    %v1898 = vadd.f32 %v1869, %v1897
    %v1899 = vpop.f32.mrf.mxu0
    %v1900 = vadd.f32 %v1871, %v1899
    %1901 = vmatmul.bf16.gmra.mxu0 %v101
    %v1902 = vpop.f32.mrf.mxu0
    %v1903 = vadd.f32 %v1874, %v1902
    %v1904 = vpop.f32.mrf.mxu0
    %v1905 = vadd.f32 %v1876, %v1904
    %1906 = vmatmul.bf16.gmra.mxu0 %v105
    %v1907 = vpop.f32.mrf.mxu0
    %v1908 = vadd.f32 %v1879, %v1907
    %v1909 = vpop.f32.mrf.mxu0
    %v1910 = vadd.f32 %v1881, %v1909
    %1911 = vdwg.mxu0
    %1912 = vmatpush.bf16.msra.mxu0 %v1033
    %1913 = vmatpush.bf16.msra.mxu0 %v1027
    %1914 = vmatpush.bf16.msra.mxu0 %v1021
    %1915 = vmatpush.bf16.msra.mxu0 %v1015
    %1916 = vmatpush.bf16.msra.mxu0 %v1009
    %1917 = vmatpush.bf16.msra.mxu0 %v1003
    %1918 = vmatpush.bf16.msra.mxu0 %v997
    %1919 = vmatpush.bf16.msra.mxu0 %v991
    %1920 = vmatmul.bf16.gmra.mxu0 %v94
    %v1921 = vpop.f32.mrf.mxu0
    %v1922 = vadd.f32 %v1893, %v1921
    %v1923 = vpop.f32.mrf.mxu0
    %v1924 = vadd.f32 %v1895, %v1923
    %1925 = vmatmul.bf16.gmra.mxu0 %v98
    %v1926 = vpop.f32.mrf.mxu0
    %v1927 = vadd.f32 %v1898, %v1926
    %v1928 = vpop.f32.mrf.mxu0
    %v1929 = vadd.f32 %v1900, %v1928
    %1930 = vmatmul.bf16.gmra.mxu0 %v102
    %v1931 = vpop.f32.mrf.mxu0
    %v1932 = vadd.f32 %v1903, %v1931
    %v1933 = vpop.f32.mrf.mxu0
    %v1934 = vadd.f32 %v1905, %v1933
    %1935 = vmatmul.bf16.gmra.mxu0 %v106
    %v1936 = vpop.f32.mrf.mxu0
    %v1937 = vadd.f32 %v1908, %v1936
    %v1938 = vpop.f32.mrf.mxu0
    %v1939 = vadd.f32 %v1910, %v1938
    %1940 = vdwg.mxu0
    %1941 = vmatpush.bf16.msra.mxu0 %v1081
    %1942 = vmatpush.bf16.msra.mxu0 %v1075
    %1943 = vmatpush.bf16.msra.mxu0 %v1069
    %1944 = vmatpush.bf16.msra.mxu0 %v1063
    %1945 = vmatpush.bf16.msra.mxu0 %v1057
    %1946 = vmatpush.bf16.msra.mxu0 %v1051
    %1947 = vmatpush.bf16.msra.mxu0 %v1045
    %1948 = vmatpush.bf16.msra.mxu0 %v1039
    %1949 = vmatmul.bf16.gmra.mxu0 %v95
    %v1950 = vpop.f32.mrf.mxu0
    %v1951 = vadd.f32 %v1922, %v1950
    %v1952 = vpop.f32.mrf.mxu0
    %v1953 = vadd.f32 %v1924, %v1952
    %1954 = vmatmul.bf16.gmra.mxu0 %v99
    %v1955 = vpop.f32.mrf.mxu0
    %v1956 = vadd.f32 %v1927, %v1955
    %v1957 = vpop.f32.mrf.mxu0
    %v1958 = vadd.f32 %v1929, %v1957
    %1959 = vmatmul.bf16.gmra.mxu0 %v103
    %v1960 = vpop.f32.mrf.mxu0
    %v1961 = vadd.f32 %v1932, %v1960
    %v1962 = vpop.f32.mrf.mxu0
    %v1963 = vadd.f32 %v1934, %v1962
    %1964 = vmatmul.bf16.gmra.mxu0 %v107
    %v1965 = vpop.f32.mrf.mxu0
    %v1966 = vadd.f32 %v1937, %v1965
    %v1967 = vpop.f32.mrf.mxu0
    %v1968 = vadd.f32 %v1939, %v1967
    %1969 = vdwg.mxu0
    %1970 = vst [vmem:[#allocation8] sm:$0xff] %v1371
    %1971 = vst [vmem:[#allocation8 + $0x8] sm:$0xff] %v1487
    %1972 = vst [vmem:[#allocation8 + $0x10] sm:$0xff] %v1603
    %1973 = vst [vmem:[#allocation8 + $0x18] sm:$0xff] %v1719
    %1974 = vst [vmem:[#allocation8 + $0x20] sm:$0xff] %v1835
    %1975 = vst [vmem:[#allocation8 + $0x28] sm:$0xff] %v1951
    %1976 = vst [vmem:[#allocation8 + $0x30] sm:$0xff] %v1373
    %1977 = vst [vmem:[#allocation8 + $0x38] sm:$0xff] %v1489
    %1978 = vst [vmem:[#allocation8 + $0x40] sm:$0xff] %v1605
    %1979 = vst [vmem:[#allocation8 + $0x48] sm:$0xff] %v1721
    %1980 = vst [vmem:[#allocation8 + $0x50] sm:$0xff] %v1837
    %1981 = vst [vmem:[#allocation8 + $0x58] sm:$0xff] %v1953
    %1982 = vst [vmem:[#allocation8 + $0x60] sm:$0xff] %v1376
    %1983 = vst [vmem:[#allocation8 + $0x68] sm:$0xff] %v1492
    %1984 = vst [vmem:[#allocation8 + $0x70] sm:$0xff] %v1608
    %1985 = vst [vmem:[#allocation8 + $0x78] sm:$0xff] %v1724
    %1986 = vst [vmem:[#allocation8 + $0x80] sm:$0xff] %v1840
    %1987 = vst [vmem:[#allocation8 + $0x88] sm:$0xff] %v1956
    %1988 = vst [vmem:[#allocation8 + $0x90] sm:$0xff] %v1378
    %1989 = vst [vmem:[#allocation8 + $0x98] sm:$0xff] %v1494
    %1990 = vst [vmem:[#allocation8 + $0xa0] sm:$0xff] %v1610
    %1991 = vst [vmem:[#allocation8 + $0xa8] sm:$0xff] %v1726
    %1992 = vst [vmem:[#allocation8 + $0xb0] sm:$0xff] %v1842
    %1993 = vst [vmem:[#allocation8 + $0xb8] sm:$0xff] %v1958
    %1994 = vst [vmem:[#allocation8 + $0xc0] sm:$0xff] %v1381
    %1995 = vst [vmem:[#allocation8 + $0xc8] sm:$0xff] %v1497
    %1996 = vst [vmem:[#allocation8 + $0xd0] sm:$0xff] %v1613
    %1997 = vst [vmem:[#allocation8 + $0xd8] sm:$0xff] %v1729
    %1998 = vst [vmem:[#allocation8 + $0xe0] sm:$0xff] %v1845
    %1999 = vst [vmem:[#allocation8 + $0xe8] sm:$0xff] %v1961
    %2000 = vst [vmem:[#allocation8 + $0xf0] sm:$0xff] %v1383
    %2001 = vst [vmem:[#allocation8 + $0xf8] sm:$0xff] %v1499
    %2002 = vst [vmem:[#allocation8 + $0x100] sm:$0xff] %v1615
    %2003 = vst [vmem:[#allocation8 + $0x108] sm:$0xff] %v1731
    %2004 = vst [vmem:[#allocation8 + $0x110] sm:$0xff] %v1847
    %2005 = vst [vmem:[#allocation8 + $0x118] sm:$0xff] %v1963
    %2006 = vst [vmem:[#allocation8 + $0x120] sm:$0xff] %v1386
    %2007 = vst [vmem:[#allocation8 + $0x128] sm:$0xff] %v1502
    %2008 = vst [vmem:[#allocation8 + $0x130] sm:$0xff] %v1618
    %2009 = vst [vmem:[#allocation8 + $0x138] sm:$0xff] %v1734
    %2010 = vst [vmem:[#allocation8 + $0x140] sm:$0xff] %v1850
    %2011 = vst [vmem:[#allocation8 + $0x148] sm:$0xff] %v1966
    %2012 = vst [vmem:[#allocation8 + $0x150] sm:$0xff] %v1388
    %2013 = vst [vmem:[#allocation8 + $0x158] sm:$0xff] %v1504
    %2014 = vst [vmem:[#allocation8 + $0x160] sm:$0xff] %v1620
    %2015 = vst [vmem:[#allocation8 + $0x168] sm:$0xff] %v1736
    %2016 = vst [vmem:[#allocation8 + $0x170] sm:$0xff] %v1852
    %2017 = vst [vmem:[#allocation8 + $0x178] sm:$0xff] %v1968
    // Predicated region
    $region26: #{tpu_custom_call.1} parent=1 // pred_check
      _
    $region27: #{tpu_custom_call.1} parent=1 // pred_check_branch
      %2019 = sbr.rel (0) target = $region29
    $region28: #{tpu_custom_call.1} parent=1 // pred_region
      %2021 = vsyncadd [#allocation4], 0
      %s2022 = sshll.u32 [#allocation8], 4
      %s2023 = int_to_ptr.vmem [resolvable:$true] %s2022
      %s2024 = sshll.u32 %s3, 4
      %s2025 = int_to_ptr.hbm [resolvable:$true] %s2024
      %2030 = dma.vmem_to_hbm [thread:$0]  %s2023, 6144, %s2025, [#allocation4], 768, 768, 48
    $region29: #{tpu_custom_call.1} parent=1 // pred_fallthru
      _
    // Predicated region
    $region30: #{tpu_custom_call.1} parent=1 // pred_check
      _
    $region31: #{tpu_custom_call.1} parent=1 // pred_check_branch
      %2032 = sbr.rel (0) target = $region33
    $region32: #{tpu_custom_call.1} parent=1 // pred_region
      %2034 = dma.done [#allocation4], 6144
    $region33: #{tpu_custom_call.1} parent=1 // pred_fallthru
      _
    %2035 = vsyncpa [#allocation3], 1
    %2036 = vsyncpa [#allocation6], 1
    %2037 = vsyncpa [#allocation4], 1

</llo_original>
